<compile_context>
chip_gen: v6e
topology: v6e:2x2x1
jax: 0.10.0
libtpu: 0.0.40
codegen_flags: <defaults>
</compile_context>

<pallas_src>
import functools

import jax
import jax.numpy as jnp
import numpy as np
from jax import lax
from jax.experimental import pallas as pl
from jax.experimental.pallas import tpu as pltpu


# ----------------------------- Model config -----------------------------

VOCAB = 100
TYPE_VOCAB = 2
MAX_POS = 16
HIDDEN = 32
NUM_HEADS = 2
HEAD_DIM = HIDDEN // NUM_HEADS
FFN = 64
LAYERS = 2
LN_EPS = 1e-12


# ----------------------------- Fused encoder kernel -----------------------------

def _encoder_kernel(x_emb_ref, mask_ref, emb_g_ref, emb_b_ref,
                    wqkv_ref, bqkv_ref, wo_ref, bo_ref,
                    ln1g_ref, ln1b_ref, w1_ref, b1_ref,
                    w2_ref, b2_ref, ln2g_ref, ln2b_ref,
                    o_ref, *, B, S, NH, Dh, eps):
    """One grid step == one encoder layer. o_ref is the VMEM-resident residual stream."""
    H = NH * Dh
    BS = B * S
    scale = 1.0 / (Dh ** 0.5)

    def layernorm(v, g, b):
        mu = jnp.mean(v, axis=-1, keepdims=True)
        var = jnp.mean(jnp.square(v - mu), axis=-1, keepdims=True)
        return (v - mu) * lax.rsqrt(var + eps) * g + b

    # Grid step 0: initialize the resident residual stream with the embedding LayerNorm
    # (no zeros-residual trick, no separate launch).
    @pl.when(pl.program_id(0) == 0)
    def _():
        o_ref[...] = layernorm(x_emb_ref[...], emb_g_ref[...], emb_b_ref[...])

    x = o_ref[...]                                            # [BS, H]

    # additive attention-mask bias, computed in-kernel:  [B, 1, S]
    bias = (1.0 - mask_ref[...]) * (-1e9)

    # ---- self-attention: fused QKV projection (single MXU pass, N = 3H) ----
    qkv = (jnp.dot(x, wqkv_ref[...], preferred_element_type=jnp.float32)
           + bqkv_ref[...])                                   # [BS, 3H]

    # Per-head attention; fold the output projection per head so the merged context is
    # accumulated directly into the [BS, H] slab (no lane-dim concat, no transposes).
    attn = jnp.zeros((BS, H), jnp.float32)
    for h in range(NH):
        qh = qkv[:, h * Dh:(h + 1) * Dh].reshape(B, S, Dh)
        kh = qkv[:, H + h * Dh:H + (h + 1) * Dh].reshape(B, S, Dh)
        vh = qkv[:, 2 * H + h * Dh:2 * H + (h + 1) * Dh].reshape(B, S, Dh)

        # QK^T contracting the Dh dims directly (no explicit k.T).
        s = jnp.einsum("bqd,bkd->bqk", qh, kh,
                       preferred_element_type=jnp.float32) * scale + bias   # [B,S,S]
        m = jnp.max(s, axis=-1, keepdims=True)
        p = jnp.exp(s - m)
        p = p * pl.reciprocal(jnp.sum(p, axis=-1, keepdims=True), approx=True)

        ch = jnp.einsum("bqk,bkd->bqd", p, vh,
                        preferred_element_type=jnp.float32).reshape(BS, Dh)
        # output projection contribution of this head: ch @ wo[h*Dh:(h+1)*Dh, :]
        attn = attn + jnp.dot(ch, wo_ref[h * Dh:(h + 1) * Dh, :],
                              preferred_element_type=jnp.float32)
    attn = attn + bo_ref[...]

    x = layernorm(attn + x, ln1g_ref[...], ln1b_ref[...])

    # ---- feed-forward (matmul + GELU + matmul + residual + LN, all in VMEM) ----
    hdn = jnp.dot(x, w1_ref[...], preferred_element_type=jnp.float32) + b1_ref[...]
    hdn = jax.nn.gelu(hdn, approximate=True)   # tanh-approx GELU (HF "gelu_new")
    ff = jnp.dot(hdn, w2_ref[...], preferred_element_type=jnp.float32) + b2_ref[...]
    x = layernorm(ff + x, ln2g_ref[...], ln2b_ref[...])

    o_ref[...] = x


def fused_encoder(x_emb, mask_f, params):
    """x_emb: [B*S, H] f32, mask_f: [B, 1, S] f32 (1=keep, 0=pad) -> [B*S, H] f32."""
    BS, H = x_emb.shape
    B, _, S = mask_f.shape
    L = params["wqkv"].shape[0]
    F = params["w1"].shape[2]

    kernel = functools.partial(_encoder_kernel, B=B, S=S,
                               NH=NUM_HEADS, Dh=HEAD_DIM, eps=LN_EPS)

    rep2 = lambda l: (0, 0)
    rep3 = lambda l: (0, 0, 0)
    per_layer = lambda l: (l, 0, 0)

    return pl.pallas_call(
        kernel,
        out_shape=jax.ShapeDtypeStruct((BS, H), jnp.float32),
        grid=(L,),
        in_specs=[
            pl.BlockSpec((BS, H), rep2),              # embeddings (used at layer 0)
            pl.BlockSpec((B, 1, S), rep3),            # attention mask
            pl.BlockSpec((1, H), rep2),               # emb LN gamma
            pl.BlockSpec((1, H), rep2),               # emb LN beta
            pl.BlockSpec((None, H, 3 * H), per_layer),   # fused Wqkv
            pl.BlockSpec((None, 1, 3 * H), per_layer),   # fused bqkv
            pl.BlockSpec((None, H, H), per_layer),       # Wo
            pl.BlockSpec((None, 1, H), per_layer),       # bo
            pl.BlockSpec((None, 1, H), per_layer),       # LN1 gamma
            pl.BlockSpec((None, 1, H), per_layer),       # LN1 beta
            pl.BlockSpec((None, H, F), per_layer),       # W1
            pl.BlockSpec((None, 1, F), per_layer),       # b1
            pl.BlockSpec((None, F, H), per_layer),       # W2
            pl.BlockSpec((None, 1, H), per_layer),       # b2
            pl.BlockSpec((None, 1, H), per_layer),       # LN2 gamma
            pl.BlockSpec((None, 1, H), per_layer),       # LN2 beta
        ],
        # Constant block index across the layer axis -> output stays resident in VMEM
        # and acts as the residual stream for the whole encoder.
        out_specs=pl.BlockSpec((BS, H), rep2),
        compiler_params=pltpu.CompilerParams(
            dimension_semantics=("arbitrary",)),
    )(x_emb, mask_f,
      params["emb_ln_g"], params["emb_ln_b"],
      params["wqkv"], params["bqkv"], params["wo"], params["bo"],
      params["ln1_g"], params["ln1_b"], params["w1"], params["b1"],
      params["w2"], params["b2"], params["ln2_g"], params["ln2_b"])


# ----------------------------- Parameters -----------------------------

def init_params(key):
    scale = 0.02
    keys = iter(jax.random.split(key, 32))

    def nrm(shape):
        return scale * jax.random.normal(next(keys), shape, dtype=jnp.float32)

    L, H, F = LAYERS, HIDDEN, FFN
    return {
        "word_emb": nrm((VOCAB, H)),
        "pos_emb": nrm((MAX_POS, H)),
        "type_emb": nrm((TYPE_VOCAB, H)),
        "emb_ln_g": jnp.ones((1, H), jnp.float32) + nrm((1, H)),
        "emb_ln_b": nrm((1, H)),
        # per-layer weights are pre-stacked ([L, ...]) and QKV is pre-fused ([H, 3H]).
        "wqkv": nrm((L, H, 3 * H)),
        "bqkv": nrm((L, 1, 3 * H)),
        "wo": nrm((L, H, H)),
        "bo": nrm((L, 1, H)),
        "ln1_g": jnp.ones((L, 1, H), jnp.float32) + nrm((L, 1, H)),
        "ln1_b": nrm((L, 1, H)),
        "w1": nrm((L, H, F)),
        "b1": nrm((L, 1, F)),
        "w2": nrm((L, F, H)),
        "b2": nrm((L, 1, H)),
        "ln2_g": jnp.ones((L, 1, H), jnp.float32) + nrm((L, 1, H)),
        "ln2_b": nrm((L, 1, H)),
    }


# ----------------------------- Forward (mirrors Transformer.forward) -----------------------------

def transformer_forward(params, features):
    """Consumes a features dict, returns it updated (like the PyTorch module)."""
    input_ids = features["input_ids"]            # [B, S] int32
    attention_mask = features["attention_mask"]  # [B, S] int32 (1 = keep, 0 = pad)
    token_type_ids = features.get("token_type_ids", jnp.zeros_like(input_ids))

    B, S = input_ids.shape
    assert S <= MAX_POS, "sequence length exceeds positional embedding table"
    H = HIDDEN

    # Embedding gathers are glue in plain JAX (no clean Pallas gather win at this size).
    emb = (params["word_emb"][input_ids]
           + params["pos_emb"][:S][None, :, :]
           + params["type_emb"][token_type_ids])              # [B, S, H]
    x_emb = emb.reshape(B * S, H).astype(jnp.float32)
    mask_f = attention_mask.astype(jnp.float32).reshape(B, 1, S)

    out_flat = fused_encoder(x_emb, mask_f, params)           # [B*S, H]

    output_tokens = out_flat.reshape(B, S, H)
    cls_tokens = output_tokens[:, 0, :]

    out = dict(features)
    out.update({
        "token_embeddings": output_tokens,
        "cls_token_embeddings": cls_tokens,
        "attention_mask": attention_mask,
    })
    # TODO(synk): 'all_layer_embeddings' only returned when config.output_hidden_states
    # is set; not exposed here (synthetic config has it off).
    return out


# ----------------------------- Pure-JAX reference (for the self-check) -----------------------------

def reference_encoder(params, input_ids, attention_mask, token_type_ids):
    B, S = input_ids.shape
    H, NH, Dh = HIDDEN, NUM_HEADS, HEAD_DIM
    x = (params["word_emb"][input_ids] + params["pos_emb"][:S][None]
         + params["type_emb"][token_type_ids]).astype(jnp.float32)

    def ln(v, g, b):
        mu = v.mean(-1, keepdims=True)
        var = jnp.square(v - mu).mean(-1, keepdims=True)
        return (v - mu) * lax.rsqrt(var + LN_EPS) * g + b

    x = ln(x, params["emb_ln_g"][0], params["emb_ln_b"][0])
    bias = (1.0 - attention_mask.astype(jnp.float32))[:, None, None, :] * -1e9
    scale = 1.0 / (Dh ** 0.5)
    for l in range(LAYERS):
        qkv = x @ params["wqkv"][l] + params["bqkv"][l][0]
        q, k, v = jnp.split(qkv, 3, axis=-1)

        def heads(t):
            return t.reshape(B, S, NH, Dh).transpose(0, 2, 1, 3)

        qh, kh, vh = heads(q), heads(k), heads(v)
        s = jnp.einsum("bhqd,bhkd->bhqk", qh, kh) * scale + bias
        p = jax.nn.softmax(s, axis=-1)
        ctx = (jnp.einsum("bhqk,bhkd->bhqd", p, vh)
               .transpose(0, 2, 1, 3).reshape(B, S, H))
        attn = ctx @ params["wo"][l] + params["bo"][l][0]
        x = ln(x + attn, params["ln1_g"][l][0], params["ln1_b"][l][0])
        h1 = jax.nn.gelu(x @ params["w1"][l] + params["b1"][l][0], approximate=True)
        ff = h1 @ params["w2"][l] + params["b2"][l][0]
        x = ln(x + ff, params["ln2_g"][l][0], params["ln2_b"][l][0])
    return x


# ----------------------------- Main -----------------------------

if __name__ == "__main__":
    key = jax.random.PRNGKey(0)
    k_param, k_ids = jax.random.split(key)

    B, S = 2, 8
    params = init_params(k_param)

    input_ids = jax.random.randint(k_ids, (B, S), 0, VOCAB, dtype=jnp.int32)
    attention_mask = jnp.ones((B, S), jnp.int32).at[1, 6:].set(0)   # second example padded
    token_type_ids = jnp.zeros((B, S), jnp.int32)

    features = {
        "input_ids": input_ids,
        "attention_mask": attention_mask,
        "token_type_ids": token_type_ids,
    }

    out = transformer_forward(params, features)
    jax.block_until_ready(out["token_embeddings"])
    jax.block_until_ready(out["cls_token_embeddings"])

    assert out["token_embeddings"].shape == (B, S, HIDDEN)
    assert out["cls_token_embeddings"].shape == (B, HIDDEN)

    # loose tolerance: MXU default f32 matmul precision + approx reciprocal in-kernel.
    ref = reference_encoder(params, input_ids, attention_mask, token_type_ids)
    np.testing.assert_allclose(np.asarray(out["token_embeddings"]), np.asarray(ref),
                               rtol=5e-2, atol=5e-2)

    print("KERNEL_OK")
</pallas_src>

<mosaic_0001>
module attributes {stable_mosaic.version = 11 : i64} {
  func.func @_encoder_kernel(%arg0: i32, %arg1: memref<16x32xf32, #tpu.memory_space<vmem>>, %arg2: memref<2x1x8xf32, #tpu.memory_space<vmem>>, %arg3: memref<1x32xf32, #tpu.memory_space<vmem>>, %arg4: memref<1x32xf32, #tpu.memory_space<vmem>>, %arg5: memref<1x32x96xf32, #tpu.memory_space<vmem>>, %arg6: memref<1x1x96xf32, #tpu.memory_space<vmem>>, %arg7: memref<1x32x32xf32, #tpu.memory_space<vmem>>, %arg8: memref<1x1x32xf32, #tpu.memory_space<vmem>>, %arg9: memref<1x1x32xf32, #tpu.memory_space<vmem>>, %arg10: memref<1x1x32xf32, #tpu.memory_space<vmem>>, %arg11: memref<1x32x64xf32, #tpu.memory_space<vmem>>, %arg12: memref<1x1x64xf32, #tpu.memory_space<vmem>>, %arg13: memref<1x64x32xf32, #tpu.memory_space<vmem>>, %arg14: memref<1x1x32xf32, #tpu.memory_space<vmem>>, %arg15: memref<1x1x32xf32, #tpu.memory_space<vmem>>, %arg16: memref<1x1x32xf32, #tpu.memory_space<vmem>>, %arg17: memref<16x32xf32, #tpu.memory_space<vmem>>) attributes {dimension_semantics = [#tpu.dimension_semantics<arbitrary>], iteration_bounds = array<i64: 2>, scalar_prefetch = 0 : i64, scratch_operands = 0 : i64, tpu.core_type = #tpu.core_type<tc>, window_params = [{pipeline_mode = #tpu.pipeline_mode<synchronous>, transform_indices = @transform_0, window_bounds = array<i64: 16, 32>}, {pipeline_mode = #tpu.pipeline_mode<synchronous>, transform_indices = @transform_1, window_bounds = array<i64: 2, 1, 8>}, {pipeline_mode = #tpu.pipeline_mode<synchronous>, transform_indices = @transform_2, window_bounds = array<i64: 1, 32>}, {pipeline_mode = #tpu.pipeline_mode<synchronous>, transform_indices = @transform_3, window_bounds = array<i64: 1, 32>}, {transform_indices = @transform_4, window_bounds = array<i64: 1, 32, 96>}, {transform_indices = @transform_5, window_bounds = array<i64: 1, 1, 96>}, {transform_indices = @transform_6, window_bounds = array<i64: 1, 32, 32>}, {transform_indices = @transform_7, window_bounds = array<i64: 1, 1, 32>}, {transform_indices = @transform_8, window_bounds = array<i64: 1, 1, 32>}, {transform_indices = @transform_9, window_bounds = array<i64: 1, 1, 32>}, {transform_indices = @transform_10, window_bounds = array<i64: 1, 32, 64>}, {transform_indices = @transform_11, window_bounds = array<i64: 1, 1, 64>}, {transform_indices = @transform_12, window_bounds = array<i64: 1, 64, 32>}, {transform_indices = @transform_13, window_bounds = array<i64: 1, 1, 32>}, {transform_indices = @transform_14, window_bounds = array<i64: 1, 1, 32>}, {transform_indices = @transform_15, window_bounds = array<i64: 1, 1, 32>}, {pipeline_mode = #tpu.pipeline_mode<synchronous>, transform_indices = @transform_16, window_bounds = array<i64: 16, 32>}]} {
    %c0_i32 = arith.constant 0 : i32
    %0 = arith.cmpi eq, %arg0, %c0_i32 : i32
    %1 = arith.extui %0 : i1 to i32
    %c0_i32_0 = arith.constant 0 : i32
    %2 = arith.cmpi ne, %1, %c0_i32_0 : i32
    scf.if %2 {
      %c0_76 = arith.constant 0 : index
      %c0_77 = arith.constant 0 : index
      %157 = vector.load %arg1[%c0_76, %c0_77] : memref<16x32xf32, #tpu.memory_space<vmem>>, vector<16x32xf32>
      %c0_78 = arith.constant 0 : index
      %c0_79 = arith.constant 0 : index
      %158 = vector.load %arg3[%c0_78, %c0_79] : memref<1x32xf32, #tpu.memory_space<vmem>>, vector<1x32xf32>
      %c0_80 = arith.constant 0 : index
      %c0_81 = arith.constant 0 : index
      %159 = vector.load %arg4[%c0_80, %c0_81] : memref<1x32xf32, #tpu.memory_space<vmem>>, vector<1x32xf32>
      %cst_82 = arith.constant dense<0.000000e+00> : vector<16xf32>
      %160 = vector.multi_reduction <add>, %157, %cst_82 [1] : vector<16x32xf32> to vector<16xf32>
      %161 = vector.shape_cast %160 : vector<16xf32> to vector<16x1xf32>
      %cst_83 = arith.constant 3.200000e+01 : f32
      %162 = vector.broadcast %cst_83 : f32 to vector<16x1xf32>
      %163 = arith.divf %161, %162 : vector<16x1xf32>
      %164 = vector.broadcast %163 : vector<16x1xf32> to vector<16x32xf32>
      %165 = arith.subf %157, %164 : vector<16x32xf32>
      %166 = arith.mulf %165, %165 : vector<16x32xf32>
      %cst_84 = arith.constant dense<0.000000e+00> : vector<16xf32>
      %167 = vector.multi_reduction <add>, %166, %cst_84 [1] : vector<16x32xf32> to vector<16xf32>
      %168 = vector.shape_cast %167 : vector<16xf32> to vector<16x1xf32>
      %cst_85 = arith.constant 3.200000e+01 : f32
      %169 = vector.broadcast %cst_85 : f32 to vector<16x1xf32>
      %170 = arith.divf %168, %169 : vector<16x1xf32>
      %171 = vector.broadcast %163 : vector<16x1xf32> to vector<16x32xf32>
      %172 = arith.subf %157, %171 : vector<16x32xf32>
      %cst_86 = arith.constant 9.99999996E-13 : f32
      %173 = vector.broadcast %cst_86 : f32 to vector<16x1xf32>
      %174 = arith.addf %170, %173 : vector<16x1xf32>
      %175 = math.rsqrt %174 : vector<16x1xf32>
      %176 = vector.broadcast %175 : vector<16x1xf32> to vector<16x32xf32>
      %177 = arith.mulf %172, %176 : vector<16x32xf32>
      %178 = vector.broadcast %158 : vector<1x32xf32> to vector<16x32xf32>
      %179 = arith.mulf %177, %178 : vector<16x32xf32>
      %180 = vector.broadcast %159 : vector<1x32xf32> to vector<16x32xf32>
      %181 = arith.addf %179, %180 : vector<16x32xf32>
      %c0_87 = arith.constant 0 : index
      %c0_88 = arith.constant 0 : index
      %182 = vector.load %arg17[%c0_87, %c0_88] : memref<16x32xf32, #tpu.memory_space<vmem>>, vector<16x32xf32>
      tpu.vector_store %arg17[%c0_87, %c0_88], %181 {strides = array<i32>} : memref<16x32xf32, #tpu.memory_space<vmem>>, vector<16x32xf32>,
    } else {
    }
    %c0 = arith.constant 0 : index
    %c0_1 = arith.constant 0 : index
    %3 = vector.load %arg17[%c0, %c0_1] : memref<16x32xf32, #tpu.memory_space<vmem>>, vector<16x32xf32>
    %c0_2 = arith.constant 0 : index
    %c0_3 = arith.constant 0 : index
    %c0_4 = arith.constant 0 : index
    %4 = vector.load %arg2[%c0_2, %c0_3, %c0_4] : memref<2x1x8xf32, #tpu.memory_space<vmem>>, vector<2x1x8xf32>
    %cst = arith.constant 1.000000e+00 : f32
    %5 = vector.broadcast %cst : f32 to vector<2x1x8xf32>
    %6 = arith.subf %5, %4 : vector<2x1x8xf32>
    %cst_5 = arith.constant -1.000000e+09 : f32
    %7 = vector.broadcast %cst_5 : f32 to vector<2x1x8xf32>
    %8 = arith.mulf %6, %7 : vector<2x1x8xf32>
    %c0_6 = arith.constant 0 : index
    %c0_7 = arith.constant 0 : index
    %c0_8 = arith.constant 0 : index
    %9 = vector.load %arg5[%c0_6, %c0_7, %c0_8] : memref<1x32x96xf32, #tpu.memory_space<vmem>>, vector<1x32x96xf32>
    %10 = vector.shape_cast %9 : vector<1x32x96xf32> to vector<32x96xf32>
    %cst_9 = arith.constant dense<0.000000e+00> : vector<16x96xf32>
    %11 = tpu.matmul %3, %10, %cst_9 {dimension_numbers = #tpu.dot_dimension_numbers<[1], [0], [0], [1], [0, 0, 1, 1], [], []>} : vector<16x32xf32>, vector<32x96xf32>, vector<16x96xf32> -> vector<16x96xf32>
    %c0_10 = arith.constant 0 : index
    %c0_11 = arith.constant 0 : index
    %c0_12 = arith.constant 0 : index
    %12 = vector.load %arg6[%c0_10, %c0_11, %c0_12] : memref<1x1x96xf32, #tpu.memory_space<vmem>>, vector<1x1x96xf32>
    %13 = vector.shape_cast %12 : vector<1x1x96xf32> to vector<1x96xf32>
    %14 = vector.broadcast %13 : vector<1x96xf32> to vector<16x96xf32>
    %15 = arith.addf %11, %14 : vector<16x96xf32>
    %cst_13 = arith.constant 0.000000e+00 : f32
    %16 = vector.broadcast %cst_13 : f32 to vector<16x32xf32>
    %17 = vector.extract_strided_slice %15 {offsets = [0, 0], sizes = [16, 16], strides = [1, 1]} : vector<16x96xf32> to vector<16x16xf32>
    %18 = vector.shape_cast %17 : vector<16x16xf32> to vector<2x8x16xf32>
    %19 = vector.extract_strided_slice %15 {offsets = [0, 32], sizes = [16, 16], strides = [1, 1]} : vector<16x96xf32> to vector<16x16xf32>
    %20 = vector.shape_cast %19 : vector<16x16xf32> to vector<2x8x16xf32>
    %21 = vector.extract_strided_slice %15 {offsets = [0, 64], sizes = [16, 16], strides = [1, 1]} : vector<16x96xf32> to vector<16x16xf32>
    %22 = vector.shape_cast %21 : vector<16x16xf32> to vector<2x8x16xf32>
    "tpu.trace_start"() <{level = 10 : i32, message = "bqd,bkd->bqk"}> : () -> ()
    %cst_14 = arith.constant dense<0.000000e+00> : vector<2x8x8xf32>
    %23 = tpu.matmul %18, %20, %cst_14 {dimension_numbers = #tpu.dot_dimension_numbers<[2], [2], [1], [1], [0, 0, 0, 1, 1, 1], [0], [0]>} : vector<2x8x16xf32>, vector<2x8x16xf32>, vector<2x8x8xf32> -> vector<2x8x8xf32>
    "tpu.trace_stop"() : () -> ()
    %cst_15 = arith.constant 2.500000e-01 : f32
    %24 = vector.broadcast %cst_15 : f32 to vector<2x8x8xf32>
    %25 = arith.mulf %23, %24 : vector<2x8x8xf32>
    %26 = vector.broadcast %8 : vector<2x1x8xf32> to vector<2x8x8xf32>
    %27 = arith.addf %25, %26 : vector<2x8x8xf32>
    %cst_16 = arith.constant dense<0xFF800000> : vector<2x8xf32>
    %28 = vector.multi_reduction <maximumf>, %27, %cst_16 [2] : vector<2x8x8xf32> to vector<2x8xf32>
    %29 = vector.shape_cast %28 : vector<2x8xf32> to vector<2x8x1xf32>
    %30 = vector.broadcast %29 : vector<2x8x1xf32> to vector<2x8x8xf32>
    %31 = arith.subf %27, %30 : vector<2x8x8xf32>
    %32 = math.exp %31 : vector<2x8x8xf32>
    %cst_17 = arith.constant dense<0.000000e+00> : vector<2x8xf32>
    %33 = vector.multi_reduction <add>, %32, %cst_17 [2] : vector<2x8x8xf32> to vector<2x8xf32>
    %34 = vector.shape_cast %33 : vector<2x8xf32> to vector<2x8x1xf32>
    %35 = tpu.reciprocal %34 {approx = true} : vector<2x8x1xf32> -> vector<2x8x1xf32>
    %36 = vector.broadcast %35 : vector<2x8x1xf32> to vector<2x8x8xf32>
    %37 = arith.mulf %32, %36 : vector<2x8x8xf32>
    "tpu.trace_start"() <{level = 10 : i32, message = "bqk,bkd->bqd"}> : () -> ()
    %cst_18 = arith.constant dense<0.000000e+00> : vector<2x8x16xf32>
    %38 = tpu.matmul %37, %22, %cst_18 {dimension_numbers = #tpu.dot_dimension_numbers<[2], [1], [1], [2], [0, 0, 0, 1, 1, 2], [0], [0]>} : vector<2x8x8xf32>, vector<2x8x16xf32>, vector<2x8x16xf32> -> vector<2x8x16xf32>
    "tpu.trace_stop"() : () -> ()
    %39 = vector.shape_cast %38 : vector<2x8x16xf32> to vector<16x16xf32>
    %c0_19 = arith.constant 0 : index
    %c0_20 = arith.constant 0 : index
    %c0_21 = arith.constant 0 : index
    %40 = vector.load %arg7[%c0_19, %c0_20, %c0_21] : memref<1x32x32xf32, #tpu.memory_space<vmem>>, vector<1x16x32xf32>
    %41 = vector.shape_cast %40 : vector<1x16x32xf32> to vector<16x32xf32>
    %cst_22 = arith.constant dense<0.000000e+00> : vector<16x32xf32>
    %42 = tpu.matmul %39, %41, %cst_22 {dimension_numbers = #tpu.dot_dimension_numbers<[1], [0], [0], [1], [0, 0, 1, 1], [], []>} : vector<16x16xf32>, vector<16x32xf32>, vector<16x32xf32> -> vector<16x32xf32>
    %43 = arith.addf %16, %42 : vector<16x32xf32>
    %44 = vector.extract_strided_slice %15 {offsets = [0, 16], sizes = [16, 16], strides = [1, 1]} : vector<16x96xf32> to vector<16x16xf32>
    %45 = vector.shape_cast %44 : vector<16x16xf32> to vector<2x8x16xf32>
    %46 = vector.extract_strided_slice %15 {offsets = [0, 48], sizes = [16, 16], strides = [1, 1]} : vector<16x96xf32> to vector<16x16xf32>
    %47 = vector.shape_cast %46 : vector<16x16xf32> to vector<2x8x16xf32>
    %48 = vector.extract_strided_slice %15 {offsets = [0, 80], sizes = [16, 16], strides = [1, 1]} : vector<16x96xf32> to vector<16x16xf32>
    %49 = vector.shape_cast %48 : vector<16x16xf32> to vector<2x8x16xf32>
    "tpu.trace_start"() <{level = 10 : i32, message = "bqd,bkd->bqk"}> : () -> ()
    %cst_23 = arith.constant dense<0.000000e+00> : vector<2x8x8xf32>
    %50 = tpu.matmul %45, %47, %cst_23 {dimension_numbers = #tpu.dot_dimension_numbers<[2], [2], [1], [1], [0, 0, 0, 1, 1, 1], [0], [0]>} : vector<2x8x16xf32>, vector<2x8x16xf32>, vector<2x8x8xf32> -> vector<2x8x8xf32>
    "tpu.trace_stop"() : () -> ()
    %cst_24 = arith.constant 2.500000e-01 : f32
    %51 = vector.broadcast %cst_24 : f32 to vector<2x8x8xf32>
    %52 = arith.mulf %50, %51 : vector<2x8x8xf32>
    %53 = vector.broadcast %8 : vector<2x1x8xf32> to vector<2x8x8xf32>
    %54 = arith.addf %52, %53 : vector<2x8x8xf32>
    %cst_25 = arith.constant dense<0xFF800000> : vector<2x8xf32>
    %55 = vector.multi_reduction <maximumf>, %54, %cst_25 [2] : vector<2x8x8xf32> to vector<2x8xf32>
    %56 = vector.shape_cast %55 : vector<2x8xf32> to vector<2x8x1xf32>
    %57 = vector.broadcast %56 : vector<2x8x1xf32> to vector<2x8x8xf32>
    %58 = arith.subf %54, %57 : vector<2x8x8xf32>
    %59 = math.exp %58 : vector<2x8x8xf32>
    %cst_26 = arith.constant dense<0.000000e+00> : vector<2x8xf32>
    %60 = vector.multi_reduction <add>, %59, %cst_26 [2] : vector<2x8x8xf32> to vector<2x8xf32>
    %61 = vector.shape_cast %60 : vector<2x8xf32> to vector<2x8x1xf32>
    %62 = tpu.reciprocal %61 {approx = true} : vector<2x8x1xf32> -> vector<2x8x1xf32>
    %63 = vector.broadcast %62 : vector<2x8x1xf32> to vector<2x8x8xf32>
    %64 = arith.mulf %59, %63 : vector<2x8x8xf32>
    "tpu.trace_start"() <{level = 10 : i32, message = "bqk,bkd->bqd"}> : () -> ()
    %cst_27 = arith.constant dense<0.000000e+00> : vector<2x8x16xf32>
    %65 = tpu.matmul %64, %49, %cst_27 {dimension_numbers = #tpu.dot_dimension_numbers<[2], [1], [1], [2], [0, 0, 0, 1, 1, 2], [0], [0]>} : vector<2x8x8xf32>, vector<2x8x16xf32>, vector<2x8x16xf32> -> vector<2x8x16xf32>
    "tpu.trace_stop"() : () -> ()
    %66 = vector.shape_cast %65 : vector<2x8x16xf32> to vector<16x16xf32>
    %c0_28 = arith.constant 0 : index
    %c16 = arith.constant 16 : index
    %c0_29 = arith.constant 0 : index
    %67 = vector.load %arg7[%c0_28, %c16, %c0_29] : memref<1x32x32xf32, #tpu.memory_space<vmem>>, vector<1x16x32xf32>
    %68 = vector.shape_cast %67 : vector<1x16x32xf32> to vector<16x32xf32>
    %cst_30 = arith.constant dense<0.000000e+00> : vector<16x32xf32>
    %69 = tpu.matmul %66, %68, %cst_30 {dimension_numbers = #tpu.dot_dimension_numbers<[1], [0], [0], [1], [0, 0, 1, 1], [], []>} : vector<16x16xf32>, vector<16x32xf32>, vector<16x32xf32> -> vector<16x32xf32>
    %70 = arith.addf %43, %69 : vector<16x32xf32>
    %c0_31 = arith.constant 0 : index
    %c0_32 = arith.constant 0 : index
    %c0_33 = arith.constant 0 : index
    %71 = vector.load %arg8[%c0_31, %c0_32, %c0_33] : memref<1x1x32xf32, #tpu.memory_space<vmem>>, vector<1x1x32xf32>
    %72 = vector.shape_cast %71 : vector<1x1x32xf32> to vector<1x32xf32>
    %73 = vector.broadcast %72 : vector<1x32xf32> to vector<16x32xf32>
    %74 = arith.addf %70, %73 : vector<16x32xf32>
    %75 = arith.addf %74, %3 : vector<16x32xf32>
    %c0_34 = arith.constant 0 : index
    %c0_35 = arith.constant 0 : index
    %c0_36 = arith.constant 0 : index
    %76 = vector.load %arg9[%c0_34, %c0_35, %c0_36] : memref<1x1x32xf32, #tpu.memory_space<vmem>>, vector<1x1x32xf32>
    %77 = vector.shape_cast %76 : vector<1x1x32xf32> to vector<1x32xf32>
    %c0_37 = arith.constant 0 : index
    %c0_38 = arith.constant 0 : index
    %c0_39 = arith.constant 0 : index
    %78 = vector.load %arg10[%c0_37, %c0_38, %c0_39] : memref<1x1x32xf32, #tpu.memory_space<vmem>>, vector<1x1x32xf32>
    %79 = vector.shape_cast %78 : vector<1x1x32xf32> to vector<1x32xf32>
    %cst_40 = arith.constant dense<0.000000e+00> : vector<16xf32>
    %80 = vector.multi_reduction <add>, %75, %cst_40 [1] : vector<16x32xf32> to vector<16xf32>
    %81 = vector.shape_cast %80 : vector<16xf32> to vector<16x1xf32>
    %cst_41 = arith.constant 3.200000e+01 : f32
    %82 = vector.broadcast %cst_41 : f32 to vector<16x1xf32>
    %83 = arith.divf %81, %82 : vector<16x1xf32>
    %84 = vector.broadcast %83 : vector<16x1xf32> to vector<16x32xf32>
    %85 = arith.subf %75, %84 : vector<16x32xf32>
    %86 = arith.mulf %85, %85 : vector<16x32xf32>
    %cst_42 = arith.constant dense<0.000000e+00> : vector<16xf32>
    %87 = vector.multi_reduction <add>, %86, %cst_42 [1] : vector<16x32xf32> to vector<16xf32>
    %88 = vector.shape_cast %87 : vector<16xf32> to vector<16x1xf32>
    %cst_43 = arith.constant 3.200000e+01 : f32
    %89 = vector.broadcast %cst_43 : f32 to vector<16x1xf32>
    %90 = arith.divf %88, %89 : vector<16x1xf32>
    %91 = vector.broadcast %83 : vector<16x1xf32> to vector<16x32xf32>
    %92 = arith.subf %75, %91 : vector<16x32xf32>
    %cst_44 = arith.constant 9.99999996E-13 : f32
    %93 = vector.broadcast %cst_44 : f32 to vector<16x1xf32>
    %94 = arith.addf %90, %93 : vector<16x1xf32>
    %95 = math.rsqrt %94 : vector<16x1xf32>
    %96 = vector.broadcast %95 : vector<16x1xf32> to vector<16x32xf32>
    %97 = arith.mulf %92, %96 : vector<16x32xf32>
    %98 = vector.broadcast %77 : vector<1x32xf32> to vector<16x32xf32>
    %99 = arith.mulf %97, %98 : vector<16x32xf32>
    %100 = vector.broadcast %79 : vector<1x32xf32> to vector<16x32xf32>
    %101 = arith.addf %99, %100 : vector<16x32xf32>
    %c0_45 = arith.constant 0 : index
    %c0_46 = arith.constant 0 : index
    %c0_47 = arith.constant 0 : index
    %102 = vector.load %arg11[%c0_45, %c0_46, %c0_47] : memref<1x32x64xf32, #tpu.memory_space<vmem>>, vector<1x32x64xf32>
    %103 = vector.shape_cast %102 : vector<1x32x64xf32> to vector<32x64xf32>
    %cst_48 = arith.constant dense<0.000000e+00> : vector<16x64xf32>
    %104 = tpu.matmul %101, %103, %cst_48 {dimension_numbers = #tpu.dot_dimension_numbers<[1], [0], [0], [1], [0, 0, 1, 1], [], []>} : vector<16x32xf32>, vector<32x64xf32>, vector<16x64xf32> -> vector<16x64xf32>
    %c0_49 = arith.constant 0 : index
    %c0_50 = arith.constant 0 : index
    %c0_51 = arith.constant 0 : index
    %105 = vector.load %arg12[%c0_49, %c0_50, %c0_51] : memref<1x1x64xf32, #tpu.memory_space<vmem>>, vector<1x1x64xf32>
    %106 = vector.shape_cast %105 : vector<1x1x64xf32> to vector<1x64xf32>
    %107 = vector.broadcast %106 : vector<1x64xf32> to vector<16x64xf32>
    %108 = arith.addf %104, %107 : vector<16x64xf32>
    %109 = arith.mulf %108, %108 : vector<16x64xf32>
    %110 = arith.mulf %108, %109 : vector<16x64xf32>
    %cst_52 = arith.constant 4.471500e-02 : f32
    %111 = vector.broadcast %cst_52 : f32 to vector<16x64xf32>
    %112 = arith.mulf %111, %110 : vector<16x64xf32>
    %113 = arith.addf %108, %112 : vector<16x64xf32>
    %cst_53 = arith.constant 0.797884583 : f32
    %114 = vector.broadcast %cst_53 : f32 to vector<16x64xf32>
    %115 = arith.mulf %114, %113 : vector<16x64xf32>
    %116 = math.tanh %115 : vector<16x64xf32>
    %cst_54 = arith.constant 1.000000e+00 : f32
    %117 = vector.broadcast %cst_54 : f32 to vector<16x64xf32>
    %118 = arith.addf %117, %116 : vector<16x64xf32>
    %cst_55 = arith.constant 5.000000e-01 : f32
    %119 = vector.broadcast %cst_55 : f32 to vector<16x64xf32>
    %120 = arith.mulf %119, %118 : vector<16x64xf32>
    %121 = arith.mulf %108, %120 : vector<16x64xf32>
    %c0_56 = arith.constant 0 : index
    %c0_57 = arith.constant 0 : index
    %c0_58 = arith.constant 0 : index
    %122 = vector.load %arg13[%c0_56, %c0_57, %c0_58] : memref<1x64x32xf32, #tpu.memory_space<vmem>>, vector<1x64x32xf32>
    %123 = vector.shape_cast %122 : vector<1x64x32xf32> to vector<64x32xf32>
    %cst_59 = arith.constant dense<0.000000e+00> : vector<16x32xf32>
    %124 = tpu.matmul %121, %123, %cst_59 {dimension_numbers = #tpu.dot_dimension_numbers<[1], [0], [0], [1], [0, 0, 1, 1], [], []>} : vector<16x64xf32>, vector<64x32xf32>, vector<16x32xf32> -> vector<16x32xf32>
    %c0_60 = arith.constant 0 : index
    %c0_61 = arith.constant 0 : index
    %c0_62 = arith.constant 0 : index
    %125 = vector.load %arg14[%c0_60, %c0_61, %c0_62] : memref<1x1x32xf32, #tpu.memory_space<vmem>>, vector<1x1x32xf32>
    %126 = vector.shape_cast %125 : vector<1x1x32xf32> to vector<1x32xf32>
    %127 = vector.broadcast %126 : vector<1x32xf32> to vector<16x32xf32>
    %128 = arith.addf %124, %127 : vector<16x32xf32>
    %129 = arith.addf %128, %101 : vector<16x32xf32>
    %c0_63 = arith.constant 0 : index
    %c0_64 = arith.constant 0 : index
    %c0_65 = arith.constant 0 : index
    %130 = vector.load %arg15[%c0_63, %c0_64, %c0_65] : memref<1x1x32xf32, #tpu.memory_space<vmem>>, vector<1x1x32xf32>
    %131 = vector.shape_cast %130 : vector<1x1x32xf32> to vector<1x32xf32>
    %c0_66 = arith.constant 0 : index
    %c0_67 = arith.constant 0 : index
    %c0_68 = arith.constant 0 : index
    %132 = vector.load %arg16[%c0_66, %c0_67, %c0_68] : memref<1x1x32xf32, #tpu.memory_space<vmem>>, vector<1x1x32xf32>
    %133 = vector.shape_cast %132 : vector<1x1x32xf32> to vector<1x32xf32>
    %cst_69 = arith.constant dense<0.000000e+00> : vector<16xf32>
    %134 = vector.multi_reduction <add>, %129, %cst_69 [1] : vector<16x32xf32> to vector<16xf32>
    %135 = vector.shape_cast %134 : vector<16xf32> to vector<16x1xf32>
    %cst_70 = arith.constant 3.200000e+01 : f32
    %136 = vector.broadcast %cst_70 : f32 to vector<16x1xf32>
    %137 = arith.divf %135, %136 : vector<16x1xf32>
    %138 = vector.broadcast %137 : vector<16x1xf32> to vector<16x32xf32>
    %139 = arith.subf %129, %138 : vector<16x32xf32>
    %140 = arith.mulf %139, %139 : vector<16x32xf32>
    %cst_71 = arith.constant dense<0.000000e+00> : vector<16xf32>
    %141 = vector.multi_reduction <add>, %140, %cst_71 [1] : vector<16x32xf32> to vector<16xf32>
    %142 = vector.shape_cast %141 : vector<16xf32> to vector<16x1xf32>
    %cst_72 = arith.constant 3.200000e+01 : f32
    %143 = vector.broadcast %cst_72 : f32 to vector<16x1xf32>
    %144 = arith.divf %142, %143 : vector<16x1xf32>
    %145 = vector.broadcast %137 : vector<16x1xf32> to vector<16x32xf32>
    %146 = arith.subf %129, %145 : vector<16x32xf32>
    %cst_73 = arith.constant 9.99999996E-13 : f32
    %147 = vector.broadcast %cst_73 : f32 to vector<16x1xf32>
    %148 = arith.addf %144, %147 : vector<16x1xf32>
    %149 = math.rsqrt %148 : vector<16x1xf32>
    %150 = vector.broadcast %149 : vector<16x1xf32> to vector<16x32xf32>
    %151 = arith.mulf %146, %150 : vector<16x32xf32>
    %152 = vector.broadcast %131 : vector<1x32xf32> to vector<16x32xf32>
    %153 = arith.mulf %151, %152 : vector<16x32xf32>
    %154 = vector.broadcast %133 : vector<1x32xf32> to vector<16x32xf32>
    %155 = arith.addf %153, %154 : vector<16x32xf32>
    %c0_74 = arith.constant 0 : index
    %c0_75 = arith.constant 0 : index
    %156 = vector.load %arg17[%c0_74, %c0_75] : memref<16x32xf32, #tpu.memory_space<vmem>>, vector<16x32xf32>
    tpu.vector_store %arg17[%c0_74, %c0_75], %155 {strides = array<i32>} : memref<16x32xf32, #tpu.memory_space<vmem>>, vector<16x32xf32>,
    return
  }
  func.func @transform_0(%arg0: i32) -> (i32, i32) {
    %c0_i32 = arith.constant 0 : i32
    %c0_i32_0 = arith.constant 0 : i32
    %c0_i32_1 = arith.constant 0 : i32
    return %c0_i32, %c0_i32_0 : i32, i32
  }
  func.func @transform_1(%arg0: i32) -> (i32, i32, i32) {
    %c0_i32 = arith.constant 0 : i32
    %c0_i32_0 = arith.constant 0 : i32
    %c0_i32_1 = arith.constant 0 : i32
    %c0_i32_2 = arith.constant 0 : i32
    return %c0_i32, %c0_i32_0, %c0_i32_1 : i32, i32, i32
  }
  func.func @transform_2(%arg0: i32) -> (i32, i32) {
    %c0_i32 = arith.constant 0 : i32
    %c0_i32_0 = arith.constant 0 : i32
    %c0_i32_1 = arith.constant 0 : i32
    return %c0_i32, %c0_i32_0 : i32, i32
  }
  func.func @transform_3(%arg0: i32) -> (i32, i32) {
    %c0_i32 = arith.constant 0 : i32
    %c0_i32_0 = arith.constant 0 : i32
    %c0_i32_1 = arith.constant 0 : i32
    return %c0_i32, %c0_i32_0 : i32, i32
  }
  func.func @transform_4(%arg0: i32) -> (i32, i32, i32) {
    %c0_i32 = arith.constant 0 : i32
    %c0_i32_0 = arith.constant 0 : i32
    %c0_i32_1 = arith.constant 0 : i32
    return %arg0, %c0_i32, %c0_i32_0 : i32, i32, i32
  }
  func.func @transform_5(%arg0: i32) -> (i32, i32, i32) {
    %c0_i32 = arith.constant 0 : i32
    %c0_i32_0 = arith.constant 0 : i32
    %c0_i32_1 = arith.constant 0 : i32
    return %arg0, %c0_i32, %c0_i32_0 : i32, i32, i32
  }
  func.func @transform_6(%arg0: i32) -> (i32, i32, i32) {
    %c0_i32 = arith.constant 0 : i32
    %c0_i32_0 = arith.constant 0 : i32
    %c0_i32_1 = arith.constant 0 : i32
    return %arg0, %c0_i32, %c0_i32_0 : i32, i32, i32
  }
  func.func @transform_7(%arg0: i32) -> (i32, i32, i32) {
    %c0_i32 = arith.constant 0 : i32
    %c0_i32_0 = arith.constant 0 : i32
    %c0_i32_1 = arith.constant 0 : i32
    return %arg0, %c0_i32, %c0_i32_0 : i32, i32, i32
  }
  func.func @transform_8(%arg0: i32) -> (i32, i32, i32) {
    %c0_i32 = arith.constant 0 : i32
    %c0_i32_0 = arith.constant 0 : i32
    %c0_i32_1 = arith.constant 0 : i32
    return %arg0, %c0_i32, %c0_i32_0 : i32, i32, i32
  }
  func.func @transform_9(%arg0: i32) -> (i32, i32, i32) {
    %c0_i32 = arith.constant 0 : i32
    %c0_i32_0 = arith.constant 0 : i32
    %c0_i32_1 = arith.constant 0 : i32
    return %arg0, %c0_i32, %c0_i32_0 : i32, i32, i32
  }
  func.func @transform_10(%arg0: i32) -> (i32, i32, i32) {
    %c0_i32 = arith.constant 0 : i32
    %c0_i32_0 = arith.constant 0 : i32
    %c0_i32_1 = arith.constant 0 : i32
    return %arg0, %c0_i32, %c0_i32_0 : i32, i32, i32
  }
  func.func @transform_11(%arg0: i32) -> (i32, i32, i32) {
    %c0_i32 = arith.constant 0 : i32
    %c0_i32_0 = arith.constant 0 : i32
    %c0_i32_1 = arith.constant 0 : i32
    return %arg0, %c0_i32, %c0_i32_0 : i32, i32, i32
  }
  func.func @transform_12(%arg0: i32) -> (i32, i32, i32) {
    %c0_i32 = arith.constant 0 : i32
    %c0_i32_0 = arith.constant 0 : i32
    %c0_i32_1 = arith.constant 0 : i32
    return %arg0, %c0_i32, %c0_i32_0 : i32, i32, i32
  }
  func.func @transform_13(%arg0: i32) -> (i32, i32, i32) {
    %c0_i32 = arith.constant 0 : i32
    %c0_i32_0 = arith.constant 0 : i32
    %c0_i32_1 = arith.constant 0 : i32
    return %arg0, %c0_i32, %c0_i32_0 : i32, i32, i32
  }
  func.func @transform_14(%arg0: i32) -> (i32, i32, i32) {
    %c0_i32 = arith.constant 0 : i32
    %c0_i32_0 = arith.constant 0 : i32
    %c0_i32_1 = arith.constant 0 : i32
    return %arg0, %c0_i32, %c0_i32_0 : i32, i32, i32
  }
  func.func @transform_15(%arg0: i32) -> (i32, i32, i32) {
    %c0_i32 = arith.constant 0 : i32
    %c0_i32_0 = arith.constant 0 : i32
    %c0_i32_1 = arith.constant 0 : i32
    return %arg0, %c0_i32, %c0_i32_0 : i32, i32, i32
  }
  func.func @transform_16(%arg0: i32) -> (i32, i32) {
    %c0_i32 = arith.constant 0 : i32
    %c0_i32_0 = arith.constant 0 : i32
    %c0_i32_1 = arith.constant 0 : i32
    return %c0_i32, %c0_i32_0 : i32, i32
  }
}

</mosaic_0001>

<llo_original>
// kernel: tpu_custom_call.1
$region0: #{tpu_custom_call.1}
  #allocation0 [shape = 'u32[]', space=smem, size = 0x4, offset = 0x4, fixed_abs, tag = 'smem constant byte address 0x4 - core index']
  #allocation1 [shape = 'u32[144,128]{1,0:T(1,128)}', space=vmem, size = 0x12000, scoped, tag = 'internal scratch']
  %s0 = inlined_call_operand.hbm [shape: f32[16,32], index: 0, kind: input, shape index: {}]
  %s1 = inlined_call_operand.hbm [shape: f32[2,1,8], index: 1, kind: input, shape index: {}]
  %s2 = inlined_call_operand.hbm [shape: f32[1,32], index: 2, kind: input, shape index: {}]
  %s3 = inlined_call_operand.hbm [shape: f32[1,32], index: 3, kind: input, shape index: {}]
  %s4 = inlined_call_operand.vmem [shape: f32[2,32,96], index: 4, kind: input, shape index: {}]
  %s5 = inlined_call_operand.vmem [shape: f32[2,1,96], index: 5, kind: input, shape index: {}]
  %s6 = inlined_call_operand.vmem [shape: f32[2,32,32], index: 6, kind: input, shape index: {}]
  %s7 = inlined_call_operand.vmem [shape: f32[2,1,32], index: 7, kind: input, shape index: {}]
  %s8 = inlined_call_operand.vmem [shape: f32[2,1,32], index: 8, kind: input, shape index: {}]
  %s9 = inlined_call_operand.vmem [shape: f32[2,1,32], index: 9, kind: input, shape index: {}]
  %s10 = inlined_call_operand.vmem [shape: f32[2,32,64], index: 10, kind: input, shape index: {}]
  %s11 = inlined_call_operand.vmem [shape: f32[2,1,64], index: 11, kind: input, shape index: {}]
  %s12 = inlined_call_operand.vmem [shape: f32[2,64,32], index: 12, kind: input, shape index: {}]
  %s13 = inlined_call_operand.vmem [shape: f32[2,1,32], index: 13, kind: input, shape index: {}]
  %s14 = inlined_call_operand.vmem [shape: f32[2,1,32], index: 14, kind: input, shape index: {}]
  %s15 = inlined_call_operand.vmem [shape: f32[2,1,32], index: 15, kind: input, shape index: {}]
  %s16 = inlined_call_operand.hbm [shape: f32[16,32], index: 16, kind: output, shape index: {}]
  %s17 = sld [smem:[#allocation0]]
  $region117: #{tpu_custom_call.1} parent=0
    _
  %s19 = ssub.s32 1, %s17
  %s20 = scalar_select 0, %s19, %s17
  $region1: #{tpu_custom_call.1} parent=0
    #allocation2 [shape = 'u8[8192]{0}', space=vmem, size = 0x2000, scoped, tag = 'input window, operand 0, single buffered']
    #allocation3 [shape = 's32[2]{0}', space=sflag, size = 0x8, scoped, tag = 'scoped memory for tpu_custom_call.1']
    #allocation4 [shape = 's32[2]{0}', space=sflag, size = 0x8, scoped, tag = 'scoped memory for tpu_custom_call.1']
    #allocation5 [shape = 'u8[1024]{0}', space=vmem, size = 0x400, scoped, tag = 'input window, operand 1, single buffered']
    #allocation6 [shape = 's32[1]{0}', space=sflag, size = 0x4, scoped, tag = 'scoped memory for tpu_custom_call.1']
    #allocation7 [shape = 'u8[512]{0}', space=vmem, size = 0x400, scoped, tag = 'input window, operand 2, single buffered']
    #allocation8 [shape = 'u8[512]{0}', space=vmem, size = 0x400, scoped, tag = 'input window, operand 3, single buffered']
    #allocation9 [shape = 's32[1]{0}', space=sflag, size = 0x4, scoped, tag = 'scoped memory for tpu_custom_call.1']
    #allocation10 [shape = 'u8[8192]{0}', space=vmem, size = 0x2000, scoped, tag = 'output window, operand 0, single buffered']
    %21 = vsyncpa [#allocation3], 0
    %22 = vsyncpa [#allocation6], 0
    %23 = vsyncpa [#allocation9], 0
    %24 = vsyncpa [#allocation4], 0
    loop: start=0, step=1, limit=4
    $region2: #{tpu_custom_call.1} parent=1 // loop_pre_header
      _
    $region3: #{tpu_custom_call.1} parent=1 // loop_header
      %s26 = sphi 0, %s30
      %p27 = scmp.ge.s32.totalorder %s26, 4
      %s34 = sphi 0, %s34
      %s36 = sphi 0, %s34
      %s37 = sphi 0, %s36
      %s51 = sphi 0, %s37
      %s55 = sphi 0, %s55
      %s57 = sphi 0, %s55
      %s58 = sphi 0, %s57
      %s72 = sphi 0, %s58
      %s76 = sphi 0, %s76
      %s78 = sphi 0, %s76
      %s79 = sphi 0, %s78
      %s93 = sphi 0, %s79
      %s97 = sphi 0, %s97
      %s99 = sphi 0, %s97
      %s100 = sphi 0, %s99
      %s114 = sphi 0, %s100
      %s120 = sphi 0, %s122
      %s123 = sphi 0, %s120
      %s124 = sphi 0, %s123
      %s140 = sphi 0, %s124
      %s146 = sphi 0, %s148
      %s149 = sphi 0, %s146
      %s150 = sphi 0, %s149
      %s166 = sphi 0, %s150
      %s172 = sphi 0, %s174
      %s175 = sphi 0, %s172
      %s176 = sphi 0, %s175
      %s192 = sphi 0, %s176
      %s198 = sphi 0, %s200
      %s201 = sphi 0, %s198
      %s202 = sphi 0, %s201
      %s218 = sphi 0, %s202
      %s224 = sphi 0, %s226
      %s227 = sphi 0, %s224
      %s228 = sphi 0, %s227
      %s244 = sphi 0, %s228
      %s250 = sphi 0, %s252
      %s253 = sphi 0, %s250
      %s254 = sphi 0, %s253
      %s270 = sphi 0, %s254
      %s276 = sphi 0, %s278
      %s279 = sphi 0, %s276
      %s280 = sphi 0, %s279
      %s296 = sphi 0, %s280
      %s302 = sphi 0, %s304
      %s305 = sphi 0, %s302
      %s306 = sphi 0, %s305
      %s322 = sphi 0, %s306
      %s328 = sphi 0, %s330
      %s331 = sphi 0, %s328
      %s332 = sphi 0, %s331
      %s348 = sphi 0, %s332
      %s354 = sphi 0, %s356
      %s357 = sphi 0, %s354
      %s358 = sphi 0, %s357
      %s374 = sphi 0, %s358
      %s380 = sphi 0, %s382
      %s383 = sphi 0, %s380
      %s384 = sphi 0, %s383
      %s400 = sphi 0, %s384
      %s406 = sphi 0, %s408
      %s409 = sphi 0, %s406
      %s410 = sphi 0, %s409
      %s426 = sphi 0, %s410
      %s430 = sphi 0, %s430
      %s432 = sphi 0, %s430
      %s433 = sphi 0, %s432
      %s447 = sphi 0, %s433
    $region4: #{tpu_custom_call.1} parent=1 // loop_header_branch
      %29 = sbr.rel (%p27) target = $region8
    $region5: #{tpu_custom_call.1} parent=1 // loop_body
      %s31 = ssub.s32 %s26, 1
      %s32 = ssub.s32 %s26, 2
      %s33 = sadd.s32 %s26, 1
      %s35 = sadd.s32 %s34, 1
      %p38 = scmp.eq.s32.totalorder %s26, 1
      %p39 = scmp.ne.s32.totalorder %s34, %s36
      %p40 = scmp.eq.s32.totalorder %s26, 0
      %p41 = por %p39, %p40
      %p42 = scmp.ne.s32.totalorder %s34, %s36
      %p43 = scmp.eq.s32.totalorder %s31, 1
      %p44 = por %p42, %p43
      %p45 = scmp.ne.s32.totalorder %s36, %s37
      %p46 = scmp.eq.s32.totalorder %s31, 0
      %p47 = por %p45, %p46
      %p48 = scmp.ne.s32.totalorder %s36, %s37
      %p49 = scmp.eq.s32.totalorder %s32, 1
      %p50 = por %p48, %p49
      %p52 = scmp.ne.s32.totalorder %s37, %s51
      %p53 = scmp.eq.s32.totalorder %s32, 0
      %p54 = por %p52, %p53
      %s56 = sadd.s32 %s55, 1
      %p59 = scmp.eq.s32.totalorder %s26, 1
      %p60 = scmp.ne.s32.totalorder %s55, %s57
      %p61 = scmp.eq.s32.totalorder %s26, 0
      %p62 = por %p60, %p61
      %p63 = scmp.ne.s32.totalorder %s55, %s57
      %p64 = scmp.eq.s32.totalorder %s31, 1
      %p65 = por %p63, %p64
      %p66 = scmp.ne.s32.totalorder %s57, %s58
      %p67 = scmp.eq.s32.totalorder %s31, 0
      %p68 = por %p66, %p67
      %p69 = scmp.ne.s32.totalorder %s57, %s58
      %p70 = scmp.eq.s32.totalorder %s32, 1
      %p71 = por %p69, %p70
      %p73 = scmp.ne.s32.totalorder %s58, %s72
      %p74 = scmp.eq.s32.totalorder %s32, 0
      %p75 = por %p73, %p74
      %s77 = sadd.s32 %s76, 1
      %p80 = scmp.eq.s32.totalorder %s26, 1
      %p81 = scmp.ne.s32.totalorder %s76, %s78
      %p82 = scmp.eq.s32.totalorder %s26, 0
      %p83 = por %p81, %p82
      %p84 = scmp.ne.s32.totalorder %s76, %s78
      %p85 = scmp.eq.s32.totalorder %s31, 1
      %p86 = por %p84, %p85
      %p87 = scmp.ne.s32.totalorder %s78, %s79
      %p88 = scmp.eq.s32.totalorder %s31, 0
      %p89 = por %p87, %p88
      %p90 = scmp.ne.s32.totalorder %s78, %s79
      %p91 = scmp.eq.s32.totalorder %s32, 1
      %p92 = por %p90, %p91
      %p94 = scmp.ne.s32.totalorder %s79, %s93
      %p95 = scmp.eq.s32.totalorder %s32, 0
      %p96 = por %p94, %p95
      %s98 = sadd.s32 %s97, 1
      %p101 = scmp.eq.s32.totalorder %s26, 1
      %p102 = scmp.ne.s32.totalorder %s97, %s99
      %p103 = scmp.eq.s32.totalorder %s26, 0
      %p104 = por %p102, %p103
      %p105 = scmp.ne.s32.totalorder %s97, %s99
      %p106 = scmp.eq.s32.totalorder %s31, 1
      %p107 = por %p105, %p106
      %p108 = scmp.ne.s32.totalorder %s99, %s100
      %p109 = scmp.eq.s32.totalorder %s31, 0
      %p110 = por %p108, %p109
      %p111 = scmp.ne.s32.totalorder %s99, %s100
      %p112 = scmp.eq.s32.totalorder %s32, 1
      %p113 = por %p111, %p112
      %p115 = scmp.ne.s32.totalorder %s100, %s114
      %p116 = scmp.eq.s32.totalorder %s32, 0
      %p117 = por %p115, %p116
      %s118 = ssub.s32 %s26, %s33
      %p119 = scmp.eq.s32.totalorder %s118, 0
      %s121 = sadd.s32 %s120, 1
      %s122 = scalar_select %p119, %s120, %s121
      %p125 = pneg %p119
      %p126 = scmp.eq.s32.totalorder %s26, 1
      %p127 = por %p125, %p126
      %p128 = scmp.ne.s32.totalorder %s120, %s123
      %p129 = scmp.eq.s32.totalorder %s26, 0
      %p130 = por %p128, %p129
      %p131 = scmp.ne.s32.totalorder %s120, %s123
      %p132 = scmp.eq.s32.totalorder %s31, 1
      %p133 = por %p131, %p132
      %p134 = scmp.ne.s32.totalorder %s123, %s124
      %p135 = scmp.eq.s32.totalorder %s31, 0
      %p136 = por %p134, %p135
      %p137 = scmp.ne.s32.totalorder %s123, %s124
      %p138 = scmp.eq.s32.totalorder %s32, 1
      %p139 = por %p137, %p138
      %p141 = scmp.ne.s32.totalorder %s124, %s140
      %p142 = scmp.eq.s32.totalorder %s32, 0
      %p143 = por %p141, %p142
      %s144 = ssub.s32 %s26, %s33
      %p145 = scmp.eq.s32.totalorder %s144, 0
      %s147 = sadd.s32 %s146, 1
      %s148 = scalar_select %p145, %s146, %s147
      %p151 = pneg %p145
      %p152 = scmp.eq.s32.totalorder %s26, 1
      %p153 = por %p151, %p152
      %p154 = scmp.ne.s32.totalorder %s146, %s149
      %p155 = scmp.eq.s32.totalorder %s26, 0
      %p156 = por %p154, %p155
      %p157 = scmp.ne.s32.totalorder %s146, %s149
      %p158 = scmp.eq.s32.totalorder %s31, 1
      %p159 = por %p157, %p158
      %p160 = scmp.ne.s32.totalorder %s149, %s150
      %p161 = scmp.eq.s32.totalorder %s31, 0
      %p162 = por %p160, %p161
      %p163 = scmp.ne.s32.totalorder %s149, %s150
      %p164 = scmp.eq.s32.totalorder %s32, 1
      %p165 = por %p163, %p164
      %p167 = scmp.ne.s32.totalorder %s150, %s166
      %p168 = scmp.eq.s32.totalorder %s32, 0
      %p169 = por %p167, %p168
      %s170 = ssub.s32 %s26, %s33
      %p171 = scmp.eq.s32.totalorder %s170, 0
      %s173 = sadd.s32 %s172, 1
      %s174 = scalar_select %p171, %s172, %s173
      %p177 = pneg %p171
      %p178 = scmp.eq.s32.totalorder %s26, 1
      %p179 = por %p177, %p178
      %p180 = scmp.ne.s32.totalorder %s172, %s175
      %p181 = scmp.eq.s32.totalorder %s26, 0
      %p182 = por %p180, %p181
      %p183 = scmp.ne.s32.totalorder %s172, %s175
      %p184 = scmp.eq.s32.totalorder %s31, 1
      %p185 = por %p183, %p184
      %p186 = scmp.ne.s32.totalorder %s175, %s176
      %p187 = scmp.eq.s32.totalorder %s31, 0
      %p188 = por %p186, %p187
      %p189 = scmp.ne.s32.totalorder %s175, %s176
      %p190 = scmp.eq.s32.totalorder %s32, 1
      %p191 = por %p189, %p190
      %p193 = scmp.ne.s32.totalorder %s176, %s192
      %p194 = scmp.eq.s32.totalorder %s32, 0
      %p195 = por %p193, %p194
      %s196 = ssub.s32 %s26, %s33
      %p197 = scmp.eq.s32.totalorder %s196, 0
      %s199 = sadd.s32 %s198, 1
      %s200 = scalar_select %p197, %s198, %s199
      %p203 = pneg %p197
      %p204 = scmp.eq.s32.totalorder %s26, 1
      %p205 = por %p203, %p204
      %p206 = scmp.ne.s32.totalorder %s198, %s201
      %p207 = scmp.eq.s32.totalorder %s26, 0
      %p208 = por %p206, %p207
      %p209 = scmp.ne.s32.totalorder %s198, %s201
      %p210 = scmp.eq.s32.totalorder %s31, 1
      %p211 = por %p209, %p210
      %p212 = scmp.ne.s32.totalorder %s201, %s202
      %p213 = scmp.eq.s32.totalorder %s31, 0
      %p214 = por %p212, %p213
      %p215 = scmp.ne.s32.totalorder %s201, %s202
      %p216 = scmp.eq.s32.totalorder %s32, 1
      %p217 = por %p215, %p216
      %p219 = scmp.ne.s32.totalorder %s202, %s218
      %p220 = scmp.eq.s32.totalorder %s32, 0
      %p221 = por %p219, %p220
      %s222 = ssub.s32 %s26, %s33
      %p223 = scmp.eq.s32.totalorder %s222, 0
      %s225 = sadd.s32 %s224, 1
      %s226 = scalar_select %p223, %s224, %s225
      %p229 = pneg %p223
      %p230 = scmp.eq.s32.totalorder %s26, 1
      %p231 = por %p229, %p230
      %p232 = scmp.ne.s32.totalorder %s224, %s227
      %p233 = scmp.eq.s32.totalorder %s26, 0
      %p234 = por %p232, %p233
      %p235 = scmp.ne.s32.totalorder %s224, %s227
      %p236 = scmp.eq.s32.totalorder %s31, 1
      %p237 = por %p235, %p236
      %p238 = scmp.ne.s32.totalorder %s227, %s228
      %p239 = scmp.eq.s32.totalorder %s31, 0
      %p240 = por %p238, %p239
      %p241 = scmp.ne.s32.totalorder %s227, %s228
      %p242 = scmp.eq.s32.totalorder %s32, 1
      %p243 = por %p241, %p242
      %p245 = scmp.ne.s32.totalorder %s228, %s244
      %p246 = scmp.eq.s32.totalorder %s32, 0
      %p247 = por %p245, %p246
      %s248 = ssub.s32 %s26, %s33
      %p249 = scmp.eq.s32.totalorder %s248, 0
      %s251 = sadd.s32 %s250, 1
      %s252 = scalar_select %p249, %s250, %s251
      %p255 = pneg %p249
      %p256 = scmp.eq.s32.totalorder %s26, 1
      %p257 = por %p255, %p256
      %p258 = scmp.ne.s32.totalorder %s250, %s253
      %p259 = scmp.eq.s32.totalorder %s26, 0
      %p260 = por %p258, %p259
      %p261 = scmp.ne.s32.totalorder %s250, %s253
      %p262 = scmp.eq.s32.totalorder %s31, 1
      %p263 = por %p261, %p262
      %p264 = scmp.ne.s32.totalorder %s253, %s254
      %p265 = scmp.eq.s32.totalorder %s31, 0
      %p266 = por %p264, %p265
      %p267 = scmp.ne.s32.totalorder %s253, %s254
      %p268 = scmp.eq.s32.totalorder %s32, 1
      %p269 = por %p267, %p268
      %p271 = scmp.ne.s32.totalorder %s254, %s270
      %p272 = scmp.eq.s32.totalorder %s32, 0
      %p273 = por %p271, %p272
      %s274 = ssub.s32 %s26, %s33
      %p275 = scmp.eq.s32.totalorder %s274, 0
      %s277 = sadd.s32 %s276, 1
      %s278 = scalar_select %p275, %s276, %s277
      %p281 = pneg %p275
      %p282 = scmp.eq.s32.totalorder %s26, 1
      %p283 = por %p281, %p282
      %p284 = scmp.ne.s32.totalorder %s276, %s279
      %p285 = scmp.eq.s32.totalorder %s26, 0
      %p286 = por %p284, %p285
      %p287 = scmp.ne.s32.totalorder %s276, %s279
      %p288 = scmp.eq.s32.totalorder %s31, 1
      %p289 = por %p287, %p288
      %p290 = scmp.ne.s32.totalorder %s279, %s280
      %p291 = scmp.eq.s32.totalorder %s31, 0
      %p292 = por %p290, %p291
      %p293 = scmp.ne.s32.totalorder %s279, %s280
      %p294 = scmp.eq.s32.totalorder %s32, 1
      %p295 = por %p293, %p294
      %p297 = scmp.ne.s32.totalorder %s280, %s296
      %p298 = scmp.eq.s32.totalorder %s32, 0
      %p299 = por %p297, %p298
      %s300 = ssub.s32 %s26, %s33
      %p301 = scmp.eq.s32.totalorder %s300, 0
      %s303 = sadd.s32 %s302, 1
      %s304 = scalar_select %p301, %s302, %s303
      %p307 = pneg %p301
      %p308 = scmp.eq.s32.totalorder %s26, 1
      %p309 = por %p307, %p308
      %p310 = scmp.ne.s32.totalorder %s302, %s305
      %p311 = scmp.eq.s32.totalorder %s26, 0
      %p312 = por %p310, %p311
      %p313 = scmp.ne.s32.totalorder %s302, %s305
      %p314 = scmp.eq.s32.totalorder %s31, 1
      %p315 = por %p313, %p314
      %p316 = scmp.ne.s32.totalorder %s305, %s306
      %p317 = scmp.eq.s32.totalorder %s31, 0
      %p318 = por %p316, %p317
      %p319 = scmp.ne.s32.totalorder %s305, %s306
      %p320 = scmp.eq.s32.totalorder %s32, 1
      %p321 = por %p319, %p320
      %p323 = scmp.ne.s32.totalorder %s306, %s322
      %p324 = scmp.eq.s32.totalorder %s32, 0
      %p325 = por %p323, %p324
      %s326 = ssub.s32 %s26, %s33
      %p327 = scmp.eq.s32.totalorder %s326, 0
      %s329 = sadd.s32 %s328, 1
      %s330 = scalar_select %p327, %s328, %s329
      %p333 = pneg %p327
      %p334 = scmp.eq.s32.totalorder %s26, 1
      %p335 = por %p333, %p334
      %p336 = scmp.ne.s32.totalorder %s328, %s331
      %p337 = scmp.eq.s32.totalorder %s26, 0
      %p338 = por %p336, %p337
      %p339 = scmp.ne.s32.totalorder %s328, %s331
      %p340 = scmp.eq.s32.totalorder %s31, 1
      %p341 = por %p339, %p340
      %p342 = scmp.ne.s32.totalorder %s331, %s332
      %p343 = scmp.eq.s32.totalorder %s31, 0
      %p344 = por %p342, %p343
      %p345 = scmp.ne.s32.totalorder %s331, %s332
      %p346 = scmp.eq.s32.totalorder %s32, 1
      %p347 = por %p345, %p346
      %p349 = scmp.ne.s32.totalorder %s332, %s348
      %p350 = scmp.eq.s32.totalorder %s32, 0
      %p351 = por %p349, %p350
      %s352 = ssub.s32 %s26, %s33
      %p353 = scmp.eq.s32.totalorder %s352, 0
      %s355 = sadd.s32 %s354, 1
      %s356 = scalar_select %p353, %s354, %s355
      %p359 = pneg %p353
      %p360 = scmp.eq.s32.totalorder %s26, 1
      %p361 = por %p359, %p360
      %p362 = scmp.ne.s32.totalorder %s354, %s357
      %p363 = scmp.eq.s32.totalorder %s26, 0
      %p364 = por %p362, %p363
      %p365 = scmp.ne.s32.totalorder %s354, %s357
      %p366 = scmp.eq.s32.totalorder %s31, 1
      %p367 = por %p365, %p366
      %p368 = scmp.ne.s32.totalorder %s357, %s358
      %p369 = scmp.eq.s32.totalorder %s31, 0
      %p370 = por %p368, %p369
      %p371 = scmp.ne.s32.totalorder %s357, %s358
      %p372 = scmp.eq.s32.totalorder %s32, 1
      %p373 = por %p371, %p372
      %p375 = scmp.ne.s32.totalorder %s358, %s374
      %p376 = scmp.eq.s32.totalorder %s32, 0
      %p377 = por %p375, %p376
      %s378 = ssub.s32 %s26, %s33
      %p379 = scmp.eq.s32.totalorder %s378, 0
      %s381 = sadd.s32 %s380, 1
      %s382 = scalar_select %p379, %s380, %s381
      %p385 = pneg %p379
      %p386 = scmp.eq.s32.totalorder %s26, 1
      %p387 = por %p385, %p386
      %p388 = scmp.ne.s32.totalorder %s380, %s383
      %p389 = scmp.eq.s32.totalorder %s26, 0
      %p390 = por %p388, %p389
      %p391 = scmp.ne.s32.totalorder %s380, %s383
      %p392 = scmp.eq.s32.totalorder %s31, 1
      %p393 = por %p391, %p392
      %p394 = scmp.ne.s32.totalorder %s383, %s384
      %p395 = scmp.eq.s32.totalorder %s31, 0
      %p396 = por %p394, %p395
      %p397 = scmp.ne.s32.totalorder %s383, %s384
      %p398 = scmp.eq.s32.totalorder %s32, 1
      %p399 = por %p397, %p398
      %p401 = scmp.ne.s32.totalorder %s384, %s400
      %p402 = scmp.eq.s32.totalorder %s32, 0
      %p403 = por %p401, %p402
      %s404 = ssub.s32 %s26, %s33
      %p405 = scmp.eq.s32.totalorder %s404, 0
      %s407 = sadd.s32 %s406, 1
      %s408 = scalar_select %p405, %s406, %s407
      %p411 = pneg %p405
      %p412 = scmp.eq.s32.totalorder %s26, 1
      %p413 = por %p411, %p412
      %p414 = scmp.ne.s32.totalorder %s406, %s409
      %p415 = scmp.eq.s32.totalorder %s26, 0
      %p416 = por %p414, %p415
      %p417 = scmp.ne.s32.totalorder %s406, %s409
      %p418 = scmp.eq.s32.totalorder %s31, 1
      %p419 = por %p417, %p418
      %p420 = scmp.ne.s32.totalorder %s409, %s410
      %p421 = scmp.eq.s32.totalorder %s31, 0
      %p422 = por %p420, %p421
      %p423 = scmp.ne.s32.totalorder %s409, %s410
      %p424 = scmp.eq.s32.totalorder %s32, 1
      %p425 = por %p423, %p424
      %p427 = scmp.ne.s32.totalorder %s410, %s426
      %p428 = scmp.eq.s32.totalorder %s32, 0
      %p429 = por %p427, %p428
      %s431 = sadd.s32 %s430, 1
      %p434 = scmp.eq.s32.totalorder %s26, 1
      %p435 = scmp.ne.s32.totalorder %s430, %s432
      %p436 = scmp.eq.s32.totalorder %s26, 0
      %p437 = por %p435, %p436
      %p438 = scmp.ne.s32.totalorder %s430, %s432
      %p439 = scmp.eq.s32.totalorder %s31, 1
      %p440 = por %p438, %p439
      %p441 = scmp.ne.s32.totalorder %s432, %s433
      %p442 = scmp.eq.s32.totalorder %s31, 0
      %p443 = por %p441, %p442
      %p444 = scmp.ne.s32.totalorder %s432, %s433
      %p445 = scmp.eq.s32.totalorder %s32, 1
      %p446 = por %p444, %p445
      %p448 = scmp.ne.s32.totalorder %s433, %s447
      %p449 = scmp.eq.s32.totalorder %s32, 0
      %p450 = por %p448, %p449
      %p451 = scmp.le.s32.totalorder 1, %s26
      %p452 = scmp.lt.s32.totalorder %s26, 3
      %p453 = pnand %p451, %p452
      %p454 = pneg %p453
      // Predicated region
      $region9: #{tpu_custom_call.1} parent=5 // pred_check
        _
      $region10: #{tpu_custom_call.1} parent=5 // pred_check_branch
        %456 = sbr.rel (%p453) target = $region12
      $region11: #{tpu_custom_call.1} parent=5 // pred_region
        %s457 = ssub.s32 %s26, 1
        // Predicated region
        $region13: #{tpu_custom_call.1} parent=11 // pred_check
          %p458 = pneg %p47
        $region14: #{tpu_custom_call.1} parent=11 // pred_check_branch
          %460 = sbr.rel (%p458) target = $region16
        $region15: #{tpu_custom_call.1} parent=11 // pred_region
          %s462 = ssub.s32 256, 256
          %463 = vsyncadd [#allocation3], %s462
          %s464 = sshll.u32 [#allocation2], 4
          %s465 = int_to_ptr.vmem [resolvable:$true] %s464
          %470 = dma.hbm_to_vmem [thread:$0]  %s0, 256, %s465, [#allocation3], 128, 128, 8
        $region16: #{tpu_custom_call.1} parent=11 // pred_fallthru
          _
        // Predicated region
        $region17: #{tpu_custom_call.1} parent=11 // pred_check
          %p471 = pneg %p68
        $region18: #{tpu_custom_call.1} parent=11 // pred_check_branch
          %473 = sbr.rel (%p471) target = $region20
        $region19: #{tpu_custom_call.1} parent=11 // pred_region
          %s475 = ssub.s32 32, 32
          %476 = vsyncadd [#allocation6], %s475
          %s477 = sshll.u32 [#allocation5], 4
          %s478 = int_to_ptr.vmem [resolvable:$true] %s477
          %483 = dma.hbm_to_vmem [thread:$0]  %s1, 32, %s478, [#allocation6], 16, 16, 1
        $region20: #{tpu_custom_call.1} parent=11 // pred_fallthru
          _
        // Predicated region
        $region21: #{tpu_custom_call.1} parent=11 // pred_check
          %p484 = pneg %p89
        $region22: #{tpu_custom_call.1} parent=11 // pred_check_branch
          %486 = sbr.rel (%p484) target = $region24
        $region23: #{tpu_custom_call.1} parent=11 // pred_region
          %s488 = ssub.s32 16, 16
          %489 = vsyncadd [#allocation6], %s488
          %s491 = sshll.u32 [#allocation7], 4
          %s492 = int_to_ptr.vmem [resolvable:$true] %s491
          %494 = dma.hbm_to_vmem [thread:$0]  %s2, 16, %s492, [#allocation6]
        $region24: #{tpu_custom_call.1} parent=11 // pred_fallthru
          _
        // Predicated region
        $region25: #{tpu_custom_call.1} parent=11 // pred_check
          %p495 = pneg %p110
        $region26: #{tpu_custom_call.1} parent=11 // pred_check_branch
          %497 = sbr.rel (%p495) target = $region28
        $region27: #{tpu_custom_call.1} parent=11 // pred_region
          %s499 = ssub.s32 16, 16
          %500 = vsyncadd [#allocation9], %s499
          %s502 = sshll.u32 [#allocation8], 4
          %s503 = int_to_ptr.vmem [resolvable:$true] %s502
          %505 = dma.hbm_to_vmem [thread:$0]  %s3, 16, %s503, [#allocation9]
        $region28: #{tpu_custom_call.1} parent=11 // pred_fallthru
          _
      $region12: #{tpu_custom_call.1} parent=5 // pred_fallthru
        _
      %p506 = scmp.lt.s32.totalorder %s26, 2
      // Predicated region
      $region29: #{tpu_custom_call.1} parent=5 // pred_check
        %p507 = pneg %p506
      $region30: #{tpu_custom_call.1} parent=5 // pred_check_branch
        %509 = sbr.rel (%p507) target = $region32
      $region31: #{tpu_custom_call.1} parent=5 // pred_region
        // Predicated region
        $region33: #{tpu_custom_call.1} parent=31 // pred_check
          %p510 = pneg %p130
        $region34: #{tpu_custom_call.1} parent=31 // pred_check_branch
          %512 = sbr.rel (%p510) target = $region36
        $region35: #{tpu_custom_call.1} parent=31 // pred_region
          %p513 = scmp.lt.s32.totalorder %s26, 1
          %s514 = scalar_select %p513, %s26, 1
          %s515 = smul.addr %s514, 4
          %s516 = smul.addr %s515, 8
          %s517 = scalar_lea.vmem %s4, %s516
        $region36: #{tpu_custom_call.1} parent=31 // pred_fallthru
          _
        // Predicated region
        $region37: #{tpu_custom_call.1} parent=31 // pred_check
          %p518 = pneg %p156
        $region38: #{tpu_custom_call.1} parent=31 // pred_check_branch
          %520 = sbr.rel (%p518) target = $region40
        $region39: #{tpu_custom_call.1} parent=31 // pred_region
          %p521 = scmp.lt.s32.totalorder %s26, 1
          %s522 = scalar_select %p521, %s26, 1
          %s523 = scalar_lea.vmem %s5, %s522
        $region40: #{tpu_custom_call.1} parent=31 // pred_fallthru
          _
        // Predicated region
        $region41: #{tpu_custom_call.1} parent=31 // pred_check
          %p524 = pneg %p182
        $region42: #{tpu_custom_call.1} parent=31 // pred_check_branch
          %526 = sbr.rel (%p524) target = $region44
        $region43: #{tpu_custom_call.1} parent=31 // pred_region
          %p527 = scmp.lt.s32.totalorder %s26, 1
          %s528 = scalar_select %p527, %s26, 1
          %s529 = smul.addr %s528, 4
          %s530 = smul.addr %s529, 8
          %s531 = scalar_lea.vmem %s6, %s530
        $region44: #{tpu_custom_call.1} parent=31 // pred_fallthru
          _
        // Predicated region
        $region45: #{tpu_custom_call.1} parent=31 // pred_check
          %p532 = pneg %p208
        $region46: #{tpu_custom_call.1} parent=31 // pred_check_branch
          %534 = sbr.rel (%p532) target = $region48
        $region47: #{tpu_custom_call.1} parent=31 // pred_region
          %p535 = scmp.lt.s32.totalorder %s26, 1
          %s536 = scalar_select %p535, %s26, 1
          %s537 = scalar_lea.vmem %s7, %s536
        $region48: #{tpu_custom_call.1} parent=31 // pred_fallthru
          _
        // Predicated region
        $region49: #{tpu_custom_call.1} parent=31 // pred_check
          %p538 = pneg %p234
        $region50: #{tpu_custom_call.1} parent=31 // pred_check_branch
          %540 = sbr.rel (%p538) target = $region52
        $region51: #{tpu_custom_call.1} parent=31 // pred_region
          %p541 = scmp.lt.s32.totalorder %s26, 1
          %s542 = scalar_select %p541, %s26, 1
          %s543 = scalar_lea.vmem %s8, %s542
        $region52: #{tpu_custom_call.1} parent=31 // pred_fallthru
          _
        // Predicated region
        $region53: #{tpu_custom_call.1} parent=31 // pred_check
          %p544 = pneg %p260
        $region54: #{tpu_custom_call.1} parent=31 // pred_check_branch
          %546 = sbr.rel (%p544) target = $region56
        $region55: #{tpu_custom_call.1} parent=31 // pred_region
          %p547 = scmp.lt.s32.totalorder %s26, 1
          %s548 = scalar_select %p547, %s26, 1
          %s549 = scalar_lea.vmem %s9, %s548
        $region56: #{tpu_custom_call.1} parent=31 // pred_fallthru
          _
        // Predicated region
        $region57: #{tpu_custom_call.1} parent=31 // pred_check
          %p550 = pneg %p286
        $region58: #{tpu_custom_call.1} parent=31 // pred_check_branch
          %552 = sbr.rel (%p550) target = $region60
        $region59: #{tpu_custom_call.1} parent=31 // pred_region
          %p553 = scmp.lt.s32.totalorder %s26, 1
          %s554 = scalar_select %p553, %s26, 1
          %s555 = smul.addr %s554, 4
          %s556 = smul.addr %s555, 8
          %s557 = scalar_lea.vmem %s10, %s556
        $region60: #{tpu_custom_call.1} parent=31 // pred_fallthru
          _
        // Predicated region
        $region61: #{tpu_custom_call.1} parent=31 // pred_check
          %p558 = pneg %p312
        $region62: #{tpu_custom_call.1} parent=31 // pred_check_branch
          %560 = sbr.rel (%p558) target = $region64
        $region63: #{tpu_custom_call.1} parent=31 // pred_region
          %p561 = scmp.lt.s32.totalorder %s26, 1
          %s562 = scalar_select %p561, %s26, 1
          %s563 = scalar_lea.vmem %s11, %s562
        $region64: #{tpu_custom_call.1} parent=31 // pred_fallthru
          _
        // Predicated region
        $region65: #{tpu_custom_call.1} parent=31 // pred_check
          %p564 = pneg %p338
        $region66: #{tpu_custom_call.1} parent=31 // pred_check_branch
          %566 = sbr.rel (%p564) target = $region68
        $region67: #{tpu_custom_call.1} parent=31 // pred_region
          %p567 = scmp.lt.s32.totalorder %s26, 1
          %s568 = scalar_select %p567, %s26, 1
          %s569 = smul.addr %s568, 8
          %s570 = smul.addr %s569, 8
          %s571 = scalar_lea.vmem %s12, %s570
        $region68: #{tpu_custom_call.1} parent=31 // pred_fallthru
          _
        // Predicated region
        $region69: #{tpu_custom_call.1} parent=31 // pred_check
          %p572 = pneg %p364
        $region70: #{tpu_custom_call.1} parent=31 // pred_check_branch
          %574 = sbr.rel (%p572) target = $region72
        $region71: #{tpu_custom_call.1} parent=31 // pred_region
          %p575 = scmp.lt.s32.totalorder %s26, 1
          %s576 = scalar_select %p575, %s26, 1
          %s577 = scalar_lea.vmem %s13, %s576
        $region72: #{tpu_custom_call.1} parent=31 // pred_fallthru
          _
        // Predicated region
        $region73: #{tpu_custom_call.1} parent=31 // pred_check
          %p578 = pneg %p390
        $region74: #{tpu_custom_call.1} parent=31 // pred_check_branch
          %580 = sbr.rel (%p578) target = $region76
        $region75: #{tpu_custom_call.1} parent=31 // pred_region
          %p581 = scmp.lt.s32.totalorder %s26, 1
          %s582 = scalar_select %p581, %s26, 1
          %s583 = scalar_lea.vmem %s14, %s582
        $region76: #{tpu_custom_call.1} parent=31 // pred_fallthru
          _
        // Predicated region
        $region77: #{tpu_custom_call.1} parent=31 // pred_check
          %p584 = pneg %p416
        $region78: #{tpu_custom_call.1} parent=31 // pred_check_branch
          %586 = sbr.rel (%p584) target = $region80
        $region79: #{tpu_custom_call.1} parent=31 // pred_region
          %p587 = scmp.lt.s32.totalorder %s26, 1
          %s588 = scalar_select %p587, %s26, 1
          %s589 = scalar_lea.vmem %s15, %s588
        $region80: #{tpu_custom_call.1} parent=31 // pred_fallthru
          _
      $region32: #{tpu_custom_call.1} parent=5 // pred_fallthru
        _
      %p590 = scmp.le.s32.totalorder 1, %s26
      %p591 = scmp.lt.s32.totalorder %s26, 3
      %p592 = pnand %p590, %p591
      %p593 = pneg %p592
      // Predicated region
      $region81: #{tpu_custom_call.1} parent=5 // pred_check
        _
      $region82: #{tpu_custom_call.1} parent=5 // pred_check_branch
        %595 = sbr.rel (%p592) target = $region84
      $region83: #{tpu_custom_call.1} parent=5 // pred_region
        %s596 = ssub.s32 %s26, 1
        // Predicated region
        $region85: #{tpu_custom_call.1} parent=83 // pred_check
          %p597 = pneg %p47
        $region86: #{tpu_custom_call.1} parent=83 // pred_check_branch
          %599 = sbr.rel (%p597) target = $region88
        $region87: #{tpu_custom_call.1} parent=83 // pred_region
          %600 = dma.done [#allocation3], 256
        $region88: #{tpu_custom_call.1} parent=83 // pred_fallthru
          _
        // Predicated region
        $region89: #{tpu_custom_call.1} parent=83 // pred_check
          %p601 = pneg %p68
        $region90: #{tpu_custom_call.1} parent=83 // pred_check_branch
          %603 = sbr.rel (%p601) target = $region92
        $region91: #{tpu_custom_call.1} parent=83 // pred_region
          %604 = dma.done [#allocation6], 32
        $region92: #{tpu_custom_call.1} parent=83 // pred_fallthru
          _
        // Predicated region
        $region93: #{tpu_custom_call.1} parent=83 // pred_check
          %p605 = pneg %p89
        $region94: #{tpu_custom_call.1} parent=83 // pred_check_branch
          %607 = sbr.rel (%p605) target = $region96
        $region95: #{tpu_custom_call.1} parent=83 // pred_region
          %608 = dma.done [#allocation6], 16
        $region96: #{tpu_custom_call.1} parent=83 // pred_fallthru
          _
        // Predicated region
        $region97: #{tpu_custom_call.1} parent=83 // pred_check
          %p609 = pneg %p110
        $region98: #{tpu_custom_call.1} parent=83 // pred_check_branch
          %611 = sbr.rel (%p609) target = $region100
        $region99: #{tpu_custom_call.1} parent=83 // pred_region
          %612 = dma.done [#allocation9], 16
        $region100: #{tpu_custom_call.1} parent=83 // pred_fallthru
          _
        %p613 = pneg %p47
        %p614 = pneg %p44
        %p615 = pneg %p68
        %p616 = pneg %p65
        %p617 = pneg %p89
        %p618 = pneg %p86
        %p619 = pneg %p110
        %p620 = pneg %p107
        %p621 = scmp.lt.s32.totalorder %s31, 1
        %s622 = scalar_select %p621, %s31, 1
        %s623 = smul.addr %s622, 4
        %s624 = smul.addr %s623, 8
        %s625 = scalar_lea.vmem %s4, %s624
        %p626 = pneg %p136
        %p627 = pneg %p133
        %p628 = scmp.lt.s32.totalorder %s31, 1
        %s629 = scalar_select %p628, %s31, 1
        %s630 = scalar_lea.vmem %s5, %s629
        %p631 = pneg %p162
        %p632 = pneg %p159
        %p633 = scmp.lt.s32.totalorder %s31, 1
        %s634 = scalar_select %p633, %s31, 1
        %s635 = smul.addr %s634, 4
        %s636 = smul.addr %s635, 8
        %s637 = scalar_lea.vmem %s6, %s636
        %p638 = pneg %p188
        %p639 = pneg %p185
        %p640 = scmp.lt.s32.totalorder %s31, 1
        %s641 = scalar_select %p640, %s31, 1
        %s642 = scalar_lea.vmem %s7, %s641
        %p643 = pneg %p214
        %p644 = pneg %p211
        %p645 = scmp.lt.s32.totalorder %s31, 1
        %s646 = scalar_select %p645, %s31, 1
        %s647 = scalar_lea.vmem %s8, %s646
        %p648 = pneg %p240
        %p649 = pneg %p237
        %p650 = scmp.lt.s32.totalorder %s31, 1
        %s651 = scalar_select %p650, %s31, 1
        %s652 = scalar_lea.vmem %s9, %s651
        %p653 = pneg %p266
        %p654 = pneg %p263
        %p655 = scmp.lt.s32.totalorder %s31, 1
        %s656 = scalar_select %p655, %s31, 1
        %s657 = smul.addr %s656, 4
        %s658 = smul.addr %s657, 8
        %s659 = scalar_lea.vmem %s10, %s658
        %p660 = pneg %p292
        %p661 = pneg %p289
        %p662 = scmp.lt.s32.totalorder %s31, 1
        %s663 = scalar_select %p662, %s31, 1
        %s664 = scalar_lea.vmem %s11, %s663
        %p665 = pneg %p318
        %p666 = pneg %p315
        %p667 = scmp.lt.s32.totalorder %s31, 1
        %s668 = scalar_select %p667, %s31, 1
        %s669 = smul.addr %s668, 8
        %s670 = smul.addr %s669, 8
        %s671 = scalar_lea.vmem %s12, %s670
        %p672 = pneg %p344
        %p673 = pneg %p341
        %p674 = scmp.lt.s32.totalorder %s31, 1
        %s675 = scalar_select %p674, %s31, 1
        %s676 = scalar_lea.vmem %s13, %s675
        %p677 = pneg %p370
        %p678 = pneg %p367
        %p679 = scmp.lt.s32.totalorder %s31, 1
        %s680 = scalar_select %p679, %s31, 1
        %s681 = scalar_lea.vmem %s14, %s680
        %p682 = pneg %p396
        %p683 = pneg %p393
        %p684 = scmp.lt.s32.totalorder %s31, 1
        %s685 = scalar_select %p684, %s31, 1
        %s686 = scalar_lea.vmem %s15, %s685
        %p687 = pneg %p422
        %p688 = pneg %p419
        %p689 = pneg %p443
        %p690 = pneg %p440
        %p691 = scmp.lt.s32.totalorder %s31, 1
        %s692 = scalar_select %p691, %s31, 1
        %s693 = smul.addr %s692, 4
        %s694 = smul.addr %s693, 8
        %s695 = scalar_lea.vmem %s4, %s694
        %p696 = scmp.lt.s32.totalorder %s31, 1
        %s697 = scalar_select %p696, %s31, 1
        %s698 = scalar_lea.vmem %s5, %s697
        %p699 = scmp.lt.s32.totalorder %s31, 1
        %s700 = scalar_select %p699, %s31, 1
        %s701 = smul.addr %s700, 4
        %s702 = smul.addr %s701, 8
        %s703 = scalar_lea.vmem %s6, %s702
        %p704 = scmp.lt.s32.totalorder %s31, 1
        %s705 = scalar_select %p704, %s31, 1
        %s706 = scalar_lea.vmem %s7, %s705
        %p707 = scmp.lt.s32.totalorder %s31, 1
        %s708 = scalar_select %p707, %s31, 1
        %s709 = scalar_lea.vmem %s8, %s708
        %p710 = scmp.lt.s32.totalorder %s31, 1
        %s711 = scalar_select %p710, %s31, 1
        %s712 = scalar_lea.vmem %s9, %s711
        %p713 = scmp.lt.s32.totalorder %s31, 1
        %s714 = scalar_select %p713, %s31, 1
        %s715 = smul.addr %s714, 4
        %s716 = smul.addr %s715, 8
        %s717 = scalar_lea.vmem %s10, %s716
        %p718 = scmp.lt.s32.totalorder %s31, 1
        %s719 = scalar_select %p718, %s31, 1
        %s720 = scalar_lea.vmem %s11, %s719
        %p721 = scmp.lt.s32.totalorder %s31, 1
        %s722 = scalar_select %p721, %s31, 1
        %s723 = smul.addr %s722, 8
        %s724 = smul.addr %s723, 8
        %s725 = scalar_lea.vmem %s12, %s724
        %p726 = scmp.lt.s32.totalorder %s31, 1
        %s727 = scalar_select %p726, %s31, 1
        %s728 = scalar_lea.vmem %s13, %s727
        %p729 = scmp.lt.s32.totalorder %s31, 1
        %s730 = scalar_select %p729, %s31, 1
        %s731 = scalar_lea.vmem %s14, %s730
        %p732 = scmp.lt.s32.totalorder %s31, 1
        %s733 = scalar_select %p732, %s31, 1
        %s734 = scalar_lea.vmem %s15, %s733
        %p735 = scmp.eq.s32.totalorder %s31, 0
        // Predicated region
        $region101: #{tpu_custom_call.1} parent=83 // pred_check
          %p736 = pneg %p735
        $region102: #{tpu_custom_call.1} parent=83 // pred_check_branch
          %738 = sbr.rel (%p736) target = $region104
        $region103: #{tpu_custom_call.1} parent=83 // pred_region
          %v739 = vld [vmem:[#allocation2] sm:$0xff]
          %v740 = vld [vmem:[#allocation2 + $0x8] sm:$0xff]
          %v741 = vld [vmem:[#allocation7] sm:$0x1]
          %v742 = vld [vmem:[#allocation8] sm:$0x1]
          %vm743 = vcmask 261120
          %v744 = vsel %vm743, %v739, 0.0
          %745 = vadd.xlane.f32.xlu0 %v744
          %v746 = vpop.xlane.xlu0 %745
          %v747 = vsel %vm743, %v740, 0.0
          %748 = vadd.xlane.f32.xlu0 %v747
          %v749 = vpop.xlane.xlu0 %748
          %v750 = vrcp.pop 32.0
          %v751 = vmul.f32 %v746, %v750
          %v752 = vmul.f32 %v749, %v750
          %v753 = vsub.f32 %v739, %v751
          %v754 = vsub.f32 %v740, %v752
          %v755 = vmul.f32 %v753, %v753
          %v756 = vmul.f32 %v754, %v754
          %v757 = vsel %vm743, %v755, 0.0
          %758 = vadd.xlane.f32.xlu0 %v757
          %v759 = vpop.xlane.xlu0 %758
          %v760 = vsel %vm743, %v756, 0.0
          %761 = vadd.xlane.f32.xlu0 %v760
          %v762 = vpop.xlane.xlu0 %761
          %v763 = vmul.f32 %v759, %v750
          %v764 = vmul.f32 %v762, %v750
          %v765 = vadd.f32 %v763, 1e-12
          %v766 = vadd.f32 %v764, 1e-12
          %v767 = vrsqrt.pop %v765
          %v768 = vrsqrt.pop %v766
          %v769 = vmul.f32 %v753, %v767
          %v770 = vmul.f32 %v754, %v768
          %v772 = vlaneseq
          %v773 = vshrl.u32 %v772, 7
          %v774 = vsub.s32 0, %v773
          %v775 = vrot.slane %v741, %v774
          %v777 = vmul.f32 %v769, %v775
          %v778 = vmul.f32 %v770, %v775
          %v780 = vlaneseq
          %v781 = vshrl.u32 %v780, 7
          %v782 = vsub.s32 0, %v781
          %v783 = vrot.slane %v742, %v782
          %v785 = vadd.f32 %v777, %v783
          %v786 = vadd.f32 %v778, %v783
          %787 = vst.msk [vmem:[#allocation10] sm:$0xff] %vm743, %v785
          %788 = vst.msk [vmem:[#allocation10 + $0x8] sm:$0xff] %vm743, %v786
        $region104: #{tpu_custom_call.1} parent=83 // pred_fallthru
          _
        %v789 = vld [vmem:[#allocation10] sm:$0xff]
        %v790 = vld [vmem:[#allocation10 + $0x8] sm:$0xff]
        %v791 = vld [vmem:[#allocation5] sm:$0x1]
        %v792 = vld [vmem:[#allocation5 + $0x1] sm:$0x1]
        %v793 = vsub.f32 1.0, %v791
        %v794 = vsub.f32 1.0, %v792
        %v795 = vmul.f32 %v793, -1e+09
        %v796 = vmul.f32 %v794, -1e+09
        %v797 = vld [vmem:[%s695] sm:$0xff]
        %v798 = vld [vmem:[%s695 + $0x8] sm:$0xff]
        %v799 = vld [vmem:[%s695 + $0x10] sm:$0xff]
        %v800 = vld [vmem:[%s695 + $0x18] sm:$0xff]
        %v801 = vld [vmem:[%s698] sm:$0x1]
        %v803 = vlaneseq
        %v804 = vshrl.u32 %v803, 7
        %v805 = vsub.s32 0, %v804
        %v806 = vrot.slane %v801, %v805
        %vm808 = vcmask 261120
        %v810 = vsel %vm808, %v789, 0
        %v813 = vsel %vm808, %v790, 0
        %815 = vmatprep.subr.mxu0 0.0
        %816 = vmatpush1.msra.mxu0 0.0
        %817 = vmatprep.subr.mxu0 0.0
        %818 = vmatpush1.msra.mxu0 0.0
        %819 = vmatprep.subr.mxu0 0.0
        %820 = vmatpush1.msra.mxu0 0.0
        %821 = vmatprep.subr.mxu0 0.0
        %822 = vmatpush1.msra.mxu0 0.0
        %823 = vmatprep.subr.mxu0 0.0
        %824 = vmatpush1.msra.mxu0 0.0
        %825 = vmatprep.subr.mxu0 0.0
        %826 = vmatpush1.msra.mxu0 0.0
        %827 = vmatprep.subr.mxu0 0.0
        %828 = vmatpush1.msra.mxu0 0.0
        %829 = vmatprep.subr.mxu0 0.0
        %830 = vmatpush1.msra.mxu0 0.0
        %831 = vmatprep.subr.mxu0 0.0
        %832 = vmatpush1.msra.mxu0 0.0
        %833 = vmatprep.subr.mxu0 0.0
        %834 = vmatpush1.msra.mxu0 0.0
        %835 = vmatprep.subr.mxu0 0.0
        %836 = vmatpush1.msra.mxu0 0.0
        %837 = vmatprep.subr.mxu0 0.0
        %838 = vmatpush1.msra.mxu0 0.0
        %839 = vmatprep.subr.mxu0 0.0
        %840 = vmatpush1.msra.mxu0 %v800
        %841 = vmatprep.subr.mxu0 0.0
        %842 = vmatpush1.msra.mxu0 %v799
        %843 = vmatprep.subr.mxu0 0.0
        %844 = vmatpush1.msra.mxu0 %v798
        %845 = vmatprep.subr.mxu0 0.0
        %846 = vmatpush1.msra.mxu0 %v797
        %847 = vmatprep.subr.mxu0 0.0
        %848 = vmatpush2.msra.mxu0 0.0
        %849 = vmatprep.subr.mxu0 0.0
        %850 = vmatpush2.msra.mxu0 0.0
        %851 = vmatprep.subr.mxu0 0.0
        %852 = vmatpush2.msra.mxu0 0.0
        %853 = vmatprep.subr.mxu0 0.0
        %854 = vmatpush2.msra.mxu0 0.0
        %855 = vmatprep.subr.mxu0 0.0
        %856 = vmatpush2.msra.mxu0 0.0
        %857 = vmatprep.subr.mxu0 0.0
        %858 = vmatpush2.msra.mxu0 0.0
        %859 = vmatprep.subr.mxu0 0.0
        %860 = vmatpush2.msra.mxu0 0.0
        %861 = vmatprep.subr.mxu0 0.0
        %862 = vmatpush2.msra.mxu0 0.0
        %863 = vmatprep.subr.mxu0 0.0
        %864 = vmatpush2.msra.mxu0 0.0
        %865 = vmatprep.subr.mxu0 0.0
        %866 = vmatpush2.msra.mxu0 0.0
        %867 = vmatprep.subr.mxu0 0.0
        %868 = vmatpush2.msra.mxu0 0.0
        %869 = vmatprep.subr.mxu0 0.0
        %870 = vmatpush2.msra.mxu0 0.0
        %871 = vmatprep.subr.mxu0 0.0
        %872 = vmatpush2.msra.mxu0 0.0
        %873 = vmatprep.subr.mxu0 0.0
        %874 = vmatpush2.msra.mxu0 0.0
        %875 = vmatprep.subr.mxu0 0.0
        %876 = vmatpush2.msra.mxu0 0.0
        %877 = vmatprep.subr.mxu0 0.0
        %878 = vmatpush2.msra.mxu0 0.0
        %879 = vmatprep.mubr.f32.mxu0 0.0
        %880 = vmatmul.mubr.f32.gmra.mxu0 %v810
        %v881 = vpop.f32.mrf.mxu0
        %v882 = vadd.f32 %v806, %v881
        %v883 = vpop.f32.mrf.mxu0
        %884 = vmatprep.mubr.f32.mxu0 0.0
        %885 = vmatmul.mubr.f32.gmra.mxu0 %v813
        %v886 = vpop.f32.mrf.mxu0
        %v887 = vadd.f32 %v806, %v886
        %v888 = vpop.f32.mrf.mxu0
        %889 = vdwg.mxu0
        %891 = vrot.lane.b32.xlu0 %v882, 96
        %v892 = vpop.permute.xlu0 %891
        %vm893 = vcmask 130048
        %v894 = vsel %vm893, %v882, 0
        %v896 = vsel %vm893, %v892, 0
        %898 = vmatprep.subr.mxu0 0.0
        %899 = vmatpush1.xpose.msra.mxu0 0.0
        %900 = vmatprep.subr.mxu0 0.0
        %901 = vmatpush1.xpose.msra.mxu0 0.0
        %902 = vmatprep.subr.mxu0 0.0
        %903 = vmatpush1.xpose.msra.mxu0 0.0
        %904 = vmatprep.subr.mxu0 0.0
        %905 = vmatpush1.xpose.msra.mxu0 0.0
        %906 = vmatprep.subr.mxu0 0.0
        %907 = vmatpush1.xpose.msra.mxu0 0.0
        %908 = vmatprep.subr.mxu0 0.0
        %909 = vmatpush1.xpose.msra.mxu0 0.0
        %910 = vmatprep.subr.mxu0 0.0
        %911 = vmatpush1.xpose.msra.mxu0 0.0
        %912 = vmatprep.subr.mxu0 0.0
        %913 = vmatpush1.xpose.msra.mxu0 0.0
        %914 = vmatprep.subr.mxu0 0.0
        %915 = vmatpush1.xpose.msra.mxu0 0.0
        %916 = vmatprep.subr.mxu0 0.0
        %917 = vmatpush1.xpose.msra.mxu0 0.0
        %918 = vmatprep.subr.mxu0 0.0
        %919 = vmatpush1.xpose.msra.mxu0 0.0
        %920 = vmatprep.subr.mxu0 0.0
        %921 = vmatpush1.xpose.msra.mxu0 0.0
        %922 = vmatprep.subr.mxu0 0.0
        %923 = vmatpush1.xpose.msra.mxu0 0.0
        %924 = vmatprep.subr.mxu0 0.0
        %925 = vmatpush1.xpose.msra.mxu0 0.0
        %926 = vmatprep.subr.mxu0 0.0
        %927 = vmatpush1.xpose.msra.mxu0 0.0
        %928 = vmatprep.subr.mxu0 0.0
        %929 = vmatpush1.xpose.msra.mxu0 %v896
        %930 = vmatprep.subr.mxu0 0.0
        %931 = vmatpush2.xpose.msra.mxu0 0.0
        %932 = vmatprep.subr.mxu0 0.0
        %933 = vmatpush2.xpose.msra.mxu0 0.0
        %934 = vmatprep.subr.mxu0 0.0
        %935 = vmatpush2.xpose.msra.mxu0 0.0
        %936 = vmatprep.subr.mxu0 0.0
        %937 = vmatpush2.xpose.msra.mxu0 0.0
        %938 = vmatprep.subr.mxu0 0.0
        %939 = vmatpush2.xpose.msra.mxu0 0.0
        %940 = vmatprep.subr.mxu0 0.0
        %941 = vmatpush2.xpose.msra.mxu0 0.0
        %942 = vmatprep.subr.mxu0 0.0
        %943 = vmatpush2.xpose.msra.mxu0 0.0
        %944 = vmatprep.subr.mxu0 0.0
        %945 = vmatpush2.xpose.msra.mxu0 0.0
        %946 = vmatprep.subr.mxu0 0.0
        %947 = vmatpush2.xpose.msra.mxu0 0.0
        %948 = vmatprep.subr.mxu0 0.0
        %949 = vmatpush2.xpose.msra.mxu0 0.0
        %950 = vmatprep.subr.mxu0 0.0
        %951 = vmatpush2.xpose.msra.mxu0 0.0
        %952 = vmatprep.subr.mxu0 0.0
        %953 = vmatpush2.xpose.msra.mxu0 0.0
        %954 = vmatprep.subr.mxu0 0.0
        %955 = vmatpush2.xpose.msra.mxu0 0.0
        %956 = vmatprep.subr.mxu0 0.0
        %957 = vmatpush2.xpose.msra.mxu0 0.0
        %958 = vmatprep.subr.mxu0 0.0
        %959 = vmatpush2.xpose.msra.mxu0 0.0
        %960 = vmatprep.subr.mxu0 0.0
        %961 = vmatpush2.xpose.msra.mxu0 0.0
        %962 = vmatprep.mubr.f32.mxu0 0.0
        %963 = vmatmul.mubr.f32.gmra.mxu0 %v894
        %v964 = vpop.f32.mrf.mxu0
        %v965 = vadd.f32 0.0, %v964
        %v966 = vpop.f32.mrf.mxu0
        %967 = vdwg.mxu0
        %969 = vrot.lane.b32.xlu0 %v887, 96
        %v970 = vpop.permute.xlu0 %969
        %v971 = vsel %vm893, %v887, 0
        %v973 = vsel %vm893, %v970, 0
        %975 = vmatprep.subr.mxu0 0.0
        %976 = vmatpush1.xpose.msra.mxu0 0.0
        %977 = vmatprep.subr.mxu0 0.0
        %978 = vmatpush1.xpose.msra.mxu0 0.0
        %979 = vmatprep.subr.mxu0 0.0
        %980 = vmatpush1.xpose.msra.mxu0 0.0
        %981 = vmatprep.subr.mxu0 0.0
        %982 = vmatpush1.xpose.msra.mxu0 0.0
        %983 = vmatprep.subr.mxu0 0.0
        %984 = vmatpush1.xpose.msra.mxu0 0.0
        %985 = vmatprep.subr.mxu0 0.0
        %986 = vmatpush1.xpose.msra.mxu0 0.0
        %987 = vmatprep.subr.mxu0 0.0
        %988 = vmatpush1.xpose.msra.mxu0 0.0
        %989 = vmatprep.subr.mxu0 0.0
        %990 = vmatpush1.xpose.msra.mxu0 0.0
        %991 = vmatprep.subr.mxu0 0.0
        %992 = vmatpush1.xpose.msra.mxu0 0.0
        %993 = vmatprep.subr.mxu0 0.0
        %994 = vmatpush1.xpose.msra.mxu0 0.0
        %995 = vmatprep.subr.mxu0 0.0
        %996 = vmatpush1.xpose.msra.mxu0 0.0
        %997 = vmatprep.subr.mxu0 0.0
        %998 = vmatpush1.xpose.msra.mxu0 0.0
        %999 = vmatprep.subr.mxu0 0.0
        %1000 = vmatpush1.xpose.msra.mxu0 0.0
        %1001 = vmatprep.subr.mxu0 0.0
        %1002 = vmatpush1.xpose.msra.mxu0 0.0
        %1003 = vmatprep.subr.mxu0 0.0
        %1004 = vmatpush1.xpose.msra.mxu0 0.0
        %1005 = vmatprep.subr.mxu0 0.0
        %1006 = vmatpush1.xpose.msra.mxu0 %v973
        %1007 = vmatprep.subr.mxu0 0.0
        %1008 = vmatpush2.xpose.msra.mxu0 0.0
        %1009 = vmatprep.subr.mxu0 0.0
        %1010 = vmatpush2.xpose.msra.mxu0 0.0
        %1011 = vmatprep.subr.mxu0 0.0
        %1012 = vmatpush2.xpose.msra.mxu0 0.0
        %1013 = vmatprep.subr.mxu0 0.0
        %1014 = vmatpush2.xpose.msra.mxu0 0.0
        %1015 = vmatprep.subr.mxu0 0.0
        %1016 = vmatpush2.xpose.msra.mxu0 0.0
        %1017 = vmatprep.subr.mxu0 0.0
        %1018 = vmatpush2.xpose.msra.mxu0 0.0
        %1019 = vmatprep.subr.mxu0 0.0
        %1020 = vmatpush2.xpose.msra.mxu0 0.0
        %1021 = vmatprep.subr.mxu0 0.0
        %1022 = vmatpush2.xpose.msra.mxu0 0.0
        %1023 = vmatprep.subr.mxu0 0.0
        %1024 = vmatpush2.xpose.msra.mxu0 0.0
        %1025 = vmatprep.subr.mxu0 0.0
        %1026 = vmatpush2.xpose.msra.mxu0 0.0
        %1027 = vmatprep.subr.mxu0 0.0
        %1028 = vmatpush2.xpose.msra.mxu0 0.0
        %1029 = vmatprep.subr.mxu0 0.0
        %1030 = vmatpush2.xpose.msra.mxu0 0.0
        %1031 = vmatprep.subr.mxu0 0.0
        %1032 = vmatpush2.xpose.msra.mxu0 0.0
        %1033 = vmatprep.subr.mxu0 0.0
        %1034 = vmatpush2.xpose.msra.mxu0 0.0
        %1035 = vmatprep.subr.mxu0 0.0
        %1036 = vmatpush2.xpose.msra.mxu0 0.0
        %1037 = vmatprep.subr.mxu0 0.0
        %1038 = vmatpush2.xpose.msra.mxu0 0.0
        %1039 = vmatprep.mubr.f32.mxu0 0.0
        %1040 = vmatmul.mubr.f32.gmra.mxu0 %v971
        %v1041 = vpop.f32.mrf.mxu0
        %v1042 = vadd.f32 0.0, %v1041
        %v1043 = vpop.f32.mrf.mxu0
        %1044 = vdwg.mxu0
        %v1045 = vmul.f32 %v965, 0.25
        %v1046 = vmul.f32 %v1042, 0.25
        %v1049 = vlaneseq
        %v1050 = vshrl.u32 %v1049, 7
        %v1051 = vsub.s32 0, %v1050
        %v1052 = vrot.slane %v795, %v1051
        %v1053 = vlaneseq
        %v1054 = vshrl.u32 %v1053, 7
        %v1055 = vsub.s32 0, %v1054
        %v1056 = vrot.slane %v796, %v1055
        %v1059 = vadd.f32 %v1045, %v1052
        %v1060 = vadd.f32 %v1046, %v1056
        %vm1061 = vcmask 64512
        %v1062 = vsel %vm1061, %v1059, -inf
        %1063 = vmax.xlane.f32.xlu0 %v1062
        %v1064 = vpop.xlane.xlu0 %1063
        %v1065 = vsel %vm1061, %v1060, -inf
        %1066 = vmax.xlane.f32.xlu0 %v1065
        %v1067 = vpop.xlane.xlu0 %1066
        %v1068 = vsub.f32 %v1059, %v1064
        %v1069 = vsub.f32 %v1060, %v1067
        %v1070 = vmul.f32 %v1068, 1.442695
        %v1071 = vpow.pop %v1070
        %v1072 = vmul.f32 %v1069, 1.442695
        %v1073 = vpow.pop %v1072
        %v1074 = vsel %vm1061, %v1071, 0.0
        %1075 = vadd.xlane.f32.xlu0 %v1074
        %v1076 = vpop.xlane.xlu0 %1075
        %v1077 = vsel %vm1061, %v1073, 0.0
        %1078 = vadd.xlane.f32.xlu0 %v1077
        %v1079 = vpop.xlane.xlu0 %1078
        %v1080 = vrcp.pop %v1076
        %v1081 = vrcp.pop %v1079
        %v1082 = vmul.f32 %v1071, %v1080
        %v1083 = vmul.f32 %v1073, %v1081
        %1084 = vrot.lane.b32.xlu0 %v882, 64
        %v1085 = vpop.permute.xlu0 %1084
        %v1088 = vsel %vm1061, %v1082, 0
        %1090 = vmatprep.subr.mxu0 0.0
        %1091 = vmatpush1.msra.mxu0 0.0
        %1092 = vmatprep.subr.mxu0 0.0
        %1093 = vmatpush1.msra.mxu0 0.0
        %1094 = vmatprep.subr.mxu0 0.0
        %1095 = vmatpush1.msra.mxu0 0.0
        %1096 = vmatprep.subr.mxu0 0.0
        %1097 = vmatpush1.msra.mxu0 0.0
        %1098 = vmatprep.subr.mxu0 0.0
        %1099 = vmatpush1.msra.mxu0 0.0
        %1100 = vmatprep.subr.mxu0 0.0
        %1101 = vmatpush1.msra.mxu0 0.0
        %1102 = vmatprep.subr.mxu0 0.0
        %1103 = vmatpush1.msra.mxu0 0.0
        %1104 = vmatprep.subr.mxu0 0.0
        %1105 = vmatpush1.msra.mxu0 0.0
        %1106 = vmatprep.subr.mxu0 0.0
        %1107 = vmatpush1.msra.mxu0 0.0
        %1108 = vmatprep.subr.mxu0 0.0
        %1109 = vmatpush1.msra.mxu0 0.0
        %1110 = vmatprep.subr.mxu0 0.0
        %1111 = vmatpush1.msra.mxu0 0.0
        %1112 = vmatprep.subr.mxu0 0.0
        %1113 = vmatpush1.msra.mxu0 0.0
        %1114 = vmatprep.subr.mxu0 0.0
        %1115 = vmatpush1.msra.mxu0 0.0
        %1116 = vmatprep.subr.mxu0 0.0
        %1117 = vmatpush1.msra.mxu0 0.0
        %1118 = vmatprep.subr.mxu0 0.0
        %1119 = vmatpush1.msra.mxu0 0.0
        %1120 = vmatprep.subr.mxu0 0.0
        %1121 = vmatpush1.msra.mxu0 %v1085
        %1122 = vmatprep.subr.mxu0 0.0
        %1123 = vmatpush2.msra.mxu0 0.0
        %1124 = vmatprep.subr.mxu0 0.0
        %1125 = vmatpush2.msra.mxu0 0.0
        %1126 = vmatprep.subr.mxu0 0.0
        %1127 = vmatpush2.msra.mxu0 0.0
        %1128 = vmatprep.subr.mxu0 0.0
        %1129 = vmatpush2.msra.mxu0 0.0
        %1130 = vmatprep.subr.mxu0 0.0
        %1131 = vmatpush2.msra.mxu0 0.0
        %1132 = vmatprep.subr.mxu0 0.0
        %1133 = vmatpush2.msra.mxu0 0.0
        %1134 = vmatprep.subr.mxu0 0.0
        %1135 = vmatpush2.msra.mxu0 0.0
        %1136 = vmatprep.subr.mxu0 0.0
        %1137 = vmatpush2.msra.mxu0 0.0
        %1138 = vmatprep.subr.mxu0 0.0
        %1139 = vmatpush2.msra.mxu0 0.0
        %1140 = vmatprep.subr.mxu0 0.0
        %1141 = vmatpush2.msra.mxu0 0.0
        %1142 = vmatprep.subr.mxu0 0.0
        %1143 = vmatpush2.msra.mxu0 0.0
        %1144 = vmatprep.subr.mxu0 0.0
        %1145 = vmatpush2.msra.mxu0 0.0
        %1146 = vmatprep.subr.mxu0 0.0
        %1147 = vmatpush2.msra.mxu0 0.0
        %1148 = vmatprep.subr.mxu0 0.0
        %1149 = vmatpush2.msra.mxu0 0.0
        %1150 = vmatprep.subr.mxu0 0.0
        %1151 = vmatpush2.msra.mxu0 0.0
        %1152 = vmatprep.subr.mxu0 0.0
        %1153 = vmatpush2.msra.mxu0 0.0
        %1154 = vmatprep.mubr.f32.mxu0 0.0
        %1155 = vmatmul.mubr.f32.gmra.mxu0 %v1088
        %v1156 = vpop.f32.mrf.mxu0
        %v1157 = vadd.f32 0.0, %v1156
        %v1158 = vpop.f32.mrf.mxu0
        %1159 = vdwg.mxu0
        %1160 = vrot.lane.b32.xlu0 %v887, 64
        %v1161 = vpop.permute.xlu0 %1160
        %v1164 = vsel %vm1061, %v1083, 0
        %1166 = vmatprep.subr.mxu0 0.0
        %1167 = vmatpush1.msra.mxu0 0.0
        %1168 = vmatprep.subr.mxu0 0.0
        %1169 = vmatpush1.msra.mxu0 0.0
        %1170 = vmatprep.subr.mxu0 0.0
        %1171 = vmatpush1.msra.mxu0 0.0
        %1172 = vmatprep.subr.mxu0 0.0
        %1173 = vmatpush1.msra.mxu0 0.0
        %1174 = vmatprep.subr.mxu0 0.0
        %1175 = vmatpush1.msra.mxu0 0.0
        %1176 = vmatprep.subr.mxu0 0.0
        %1177 = vmatpush1.msra.mxu0 0.0
        %1178 = vmatprep.subr.mxu0 0.0
        %1179 = vmatpush1.msra.mxu0 0.0
        %1180 = vmatprep.subr.mxu0 0.0
        %1181 = vmatpush1.msra.mxu0 0.0
        %1182 = vmatprep.subr.mxu0 0.0
        %1183 = vmatpush1.msra.mxu0 0.0
        %1184 = vmatprep.subr.mxu0 0.0
        %1185 = vmatpush1.msra.mxu0 0.0
        %1186 = vmatprep.subr.mxu0 0.0
        %1187 = vmatpush1.msra.mxu0 0.0
        %1188 = vmatprep.subr.mxu0 0.0
        %1189 = vmatpush1.msra.mxu0 0.0
        %1190 = vmatprep.subr.mxu0 0.0
        %1191 = vmatpush1.msra.mxu0 0.0
        %1192 = vmatprep.subr.mxu0 0.0
        %1193 = vmatpush1.msra.mxu0 0.0
        %1194 = vmatprep.subr.mxu0 0.0
        %1195 = vmatpush1.msra.mxu0 0.0
        %1196 = vmatprep.subr.mxu0 0.0
        %1197 = vmatpush1.msra.mxu0 %v1161
        %1198 = vmatprep.subr.mxu0 0.0
        %1199 = vmatpush2.msra.mxu0 0.0
        %1200 = vmatprep.subr.mxu0 0.0
        %1201 = vmatpush2.msra.mxu0 0.0
        %1202 = vmatprep.subr.mxu0 0.0
        %1203 = vmatpush2.msra.mxu0 0.0
        %1204 = vmatprep.subr.mxu0 0.0
        %1205 = vmatpush2.msra.mxu0 0.0
        %1206 = vmatprep.subr.mxu0 0.0
        %1207 = vmatpush2.msra.mxu0 0.0
        %1208 = vmatprep.subr.mxu0 0.0
        %1209 = vmatpush2.msra.mxu0 0.0
        %1210 = vmatprep.subr.mxu0 0.0
        %1211 = vmatpush2.msra.mxu0 0.0
        %1212 = vmatprep.subr.mxu0 0.0
        %1213 = vmatpush2.msra.mxu0 0.0
        %1214 = vmatprep.subr.mxu0 0.0
        %1215 = vmatpush2.msra.mxu0 0.0
        %1216 = vmatprep.subr.mxu0 0.0
        %1217 = vmatpush2.msra.mxu0 0.0
        %1218 = vmatprep.subr.mxu0 0.0
        %1219 = vmatpush2.msra.mxu0 0.0
        %1220 = vmatprep.subr.mxu0 0.0
        %1221 = vmatpush2.msra.mxu0 0.0
        %1222 = vmatprep.subr.mxu0 0.0
        %1223 = vmatpush2.msra.mxu0 0.0
        %1224 = vmatprep.subr.mxu0 0.0
        %1225 = vmatpush2.msra.mxu0 0.0
        %1226 = vmatprep.subr.mxu0 0.0
        %1227 = vmatpush2.msra.mxu0 0.0
        %1228 = vmatprep.subr.mxu0 0.0
        %1229 = vmatpush2.msra.mxu0 0.0
        %1230 = vmatprep.mubr.f32.mxu0 0.0
        %1231 = vmatmul.mubr.f32.gmra.mxu0 %v1164
        %v1232 = vpop.f32.mrf.mxu0
        %v1233 = vadd.f32 0.0, %v1232
        %v1234 = vpop.f32.mrf.mxu0
        %1235 = vdwg.mxu0
        %v1236 = vld [vmem:[%s703] sm:$0xff]
        %v1237 = vld [vmem:[%s703 + $0x8] sm:$0xff]
        %1238 = vrot.lane.b32.xlu0 %v882, 112
        %v1239 = vpop.permute.xlu0 %1238
        %1240 = vrot.lane.b32.xlu0 %v882, 80
        %v1241 = vpop.permute.xlu0 %1240
        %v1242 = vsel %vm893, %v1239, 0
        %v1244 = vsel %vm893, %v1241, 0
        %1246 = vmatprep.subr.mxu0 0.0
        %1247 = vmatpush1.xpose.msra.mxu0 0.0
        %1248 = vmatprep.subr.mxu0 0.0
        %1249 = vmatpush1.xpose.msra.mxu0 0.0
        %1250 = vmatprep.subr.mxu0 0.0
        %1251 = vmatpush1.xpose.msra.mxu0 0.0
        %1252 = vmatprep.subr.mxu0 0.0
        %1253 = vmatpush1.xpose.msra.mxu0 0.0
        %1254 = vmatprep.subr.mxu0 0.0
        %1255 = vmatpush1.xpose.msra.mxu0 0.0
        %1256 = vmatprep.subr.mxu0 0.0
        %1257 = vmatpush1.xpose.msra.mxu0 0.0
        %1258 = vmatprep.subr.mxu0 0.0
        %1259 = vmatpush1.xpose.msra.mxu0 0.0
        %1260 = vmatprep.subr.mxu0 0.0
        %1261 = vmatpush1.xpose.msra.mxu0 0.0
        %1262 = vmatprep.subr.mxu0 0.0
        %1263 = vmatpush1.xpose.msra.mxu0 0.0
        %1264 = vmatprep.subr.mxu0 0.0
        %1265 = vmatpush1.xpose.msra.mxu0 0.0
        %1266 = vmatprep.subr.mxu0 0.0
        %1267 = vmatpush1.xpose.msra.mxu0 0.0
        %1268 = vmatprep.subr.mxu0 0.0
        %1269 = vmatpush1.xpose.msra.mxu0 0.0
        %1270 = vmatprep.subr.mxu0 0.0
        %1271 = vmatpush1.xpose.msra.mxu0 0.0
        %1272 = vmatprep.subr.mxu0 0.0
        %1273 = vmatpush1.xpose.msra.mxu0 0.0
        %1274 = vmatprep.subr.mxu0 0.0
        %1275 = vmatpush1.xpose.msra.mxu0 0.0
        %1276 = vmatprep.subr.mxu0 0.0
        %1277 = vmatpush1.xpose.msra.mxu0 %v1244
        %1278 = vmatprep.subr.mxu0 0.0
        %1279 = vmatpush2.xpose.msra.mxu0 0.0
        %1280 = vmatprep.subr.mxu0 0.0
        %1281 = vmatpush2.xpose.msra.mxu0 0.0
        %1282 = vmatprep.subr.mxu0 0.0
        %1283 = vmatpush2.xpose.msra.mxu0 0.0
        %1284 = vmatprep.subr.mxu0 0.0
        %1285 = vmatpush2.xpose.msra.mxu0 0.0
        %1286 = vmatprep.subr.mxu0 0.0
        %1287 = vmatpush2.xpose.msra.mxu0 0.0
        %1288 = vmatprep.subr.mxu0 0.0
        %1289 = vmatpush2.xpose.msra.mxu0 0.0
        %1290 = vmatprep.subr.mxu0 0.0
        %1291 = vmatpush2.xpose.msra.mxu0 0.0
        %1292 = vmatprep.subr.mxu0 0.0
        %1293 = vmatpush2.xpose.msra.mxu0 0.0
        %1294 = vmatprep.subr.mxu0 0.0
        %1295 = vmatpush2.xpose.msra.mxu0 0.0
        %1296 = vmatprep.subr.mxu0 0.0
        %1297 = vmatpush2.xpose.msra.mxu0 0.0
        %1298 = vmatprep.subr.mxu0 0.0
        %1299 = vmatpush2.xpose.msra.mxu0 0.0
        %1300 = vmatprep.subr.mxu0 0.0
        %1301 = vmatpush2.xpose.msra.mxu0 0.0
        %1302 = vmatprep.subr.mxu0 0.0
        %1303 = vmatpush2.xpose.msra.mxu0 0.0
        %1304 = vmatprep.subr.mxu0 0.0
        %1305 = vmatpush2.xpose.msra.mxu0 0.0
        %1306 = vmatprep.subr.mxu0 0.0
        %1307 = vmatpush2.xpose.msra.mxu0 0.0
        %1308 = vmatprep.subr.mxu0 0.0
        %1309 = vmatpush2.xpose.msra.mxu0 0.0
        %1310 = vmatprep.mubr.f32.mxu0 0.0
        %1311 = vmatmul.mubr.f32.gmra.mxu0 %v1242
        %v1312 = vpop.f32.mrf.mxu0
        %v1313 = vadd.f32 0.0, %v1312
        %v1314 = vpop.f32.mrf.mxu0
        %1315 = vdwg.mxu0
        %1316 = vrot.lane.b32.xlu0 %v887, 112
        %v1317 = vpop.permute.xlu0 %1316
        %1318 = vrot.lane.b32.xlu0 %v887, 80
        %v1319 = vpop.permute.xlu0 %1318
        %v1320 = vsel %vm893, %v1317, 0
        %v1322 = vsel %vm893, %v1319, 0
        %1324 = vmatprep.subr.mxu0 0.0
        %1325 = vmatpush1.xpose.msra.mxu0 0.0
        %1326 = vmatprep.subr.mxu0 0.0
        %1327 = vmatpush1.xpose.msra.mxu0 0.0
        %1328 = vmatprep.subr.mxu0 0.0
        %1329 = vmatpush1.xpose.msra.mxu0 0.0
        %1330 = vmatprep.subr.mxu0 0.0
        %1331 = vmatpush1.xpose.msra.mxu0 0.0
        %1332 = vmatprep.subr.mxu0 0.0
        %1333 = vmatpush1.xpose.msra.mxu0 0.0
        %1334 = vmatprep.subr.mxu0 0.0
        %1335 = vmatpush1.xpose.msra.mxu0 0.0
        %1336 = vmatprep.subr.mxu0 0.0
        %1337 = vmatpush1.xpose.msra.mxu0 0.0
        %1338 = vmatprep.subr.mxu0 0.0
        %1339 = vmatpush1.xpose.msra.mxu0 0.0
        %1340 = vmatprep.subr.mxu0 0.0
        %1341 = vmatpush1.xpose.msra.mxu0 0.0
        %1342 = vmatprep.subr.mxu0 0.0
        %1343 = vmatpush1.xpose.msra.mxu0 0.0
        %1344 = vmatprep.subr.mxu0 0.0
        %1345 = vmatpush1.xpose.msra.mxu0 0.0
        %1346 = vmatprep.subr.mxu0 0.0
        %1347 = vmatpush1.xpose.msra.mxu0 0.0
        %1348 = vmatprep.subr.mxu0 0.0
        %1349 = vmatpush1.xpose.msra.mxu0 0.0
        %1350 = vmatprep.subr.mxu0 0.0
        %1351 = vmatpush1.xpose.msra.mxu0 0.0
        %1352 = vmatprep.subr.mxu0 0.0
        %1353 = vmatpush1.xpose.msra.mxu0 0.0
        %1354 = vmatprep.subr.mxu0 0.0
        %1355 = vmatpush1.xpose.msra.mxu0 %v1322
        %1356 = vmatprep.subr.mxu0 0.0
        %1357 = vmatpush2.xpose.msra.mxu0 0.0
        %1358 = vmatprep.subr.mxu0 0.0
        %1359 = vmatpush2.xpose.msra.mxu0 0.0
        %1360 = vmatprep.subr.mxu0 0.0
        %1361 = vmatpush2.xpose.msra.mxu0 0.0
        %1362 = vmatprep.subr.mxu0 0.0
        %1363 = vmatpush2.xpose.msra.mxu0 0.0
        %1364 = vmatprep.subr.mxu0 0.0
        %1365 = vmatpush2.xpose.msra.mxu0 0.0
        %1366 = vmatprep.subr.mxu0 0.0
        %1367 = vmatpush2.xpose.msra.mxu0 0.0
        %1368 = vmatprep.subr.mxu0 0.0
        %1369 = vmatpush2.xpose.msra.mxu0 0.0
        %1370 = vmatprep.subr.mxu0 0.0
        %1371 = vmatpush2.xpose.msra.mxu0 0.0
        %1372 = vmatprep.subr.mxu0 0.0
        %1373 = vmatpush2.xpose.msra.mxu0 0.0
        %1374 = vmatprep.subr.mxu0 0.0
        %1375 = vmatpush2.xpose.msra.mxu0 0.0
        %1376 = vmatprep.subr.mxu0 0.0
        %1377 = vmatpush2.xpose.msra.mxu0 0.0
        %1378 = vmatprep.subr.mxu0 0.0
        %1379 = vmatpush2.xpose.msra.mxu0 0.0
        %1380 = vmatprep.subr.mxu0 0.0
        %1381 = vmatpush2.xpose.msra.mxu0 0.0
        %1382 = vmatprep.subr.mxu0 0.0
        %1383 = vmatpush2.xpose.msra.mxu0 0.0
        %1384 = vmatprep.subr.mxu0 0.0
        %1385 = vmatpush2.xpose.msra.mxu0 0.0
        %1386 = vmatprep.subr.mxu0 0.0
        %1387 = vmatpush2.xpose.msra.mxu0 0.0
        %1388 = vmatprep.mubr.f32.mxu0 0.0
        %1389 = vmatmul.mubr.f32.gmra.mxu0 %v1320
        %v1390 = vpop.f32.mrf.mxu0
        %v1391 = vadd.f32 0.0, %v1390
        %v1392 = vpop.f32.mrf.mxu0
        %1393 = vdwg.mxu0
        %v1394 = vmul.f32 %v1313, 0.25
        %v1395 = vmul.f32 %v1391, 0.25
        %v1396 = vadd.f32 %v1394, %v1052
        %v1397 = vadd.f32 %v1395, %v1056
        %v1398 = vsel %vm1061, %v1396, -inf
        %1399 = vmax.xlane.f32.xlu0 %v1398
        %v1400 = vpop.xlane.xlu0 %1399
        %v1401 = vsel %vm1061, %v1397, -inf
        %1402 = vmax.xlane.f32.xlu0 %v1401
        %v1403 = vpop.xlane.xlu0 %1402
        %v1404 = vsub.f32 %v1396, %v1400
        %v1405 = vsub.f32 %v1397, %v1403
        %v1406 = vmul.f32 %v1404, 1.442695
        %v1407 = vpow.pop %v1406
        %v1408 = vmul.f32 %v1405, 1.442695
        %v1409 = vpow.pop %v1408
        %v1410 = vsel %vm1061, %v1407, 0.0
        %1411 = vadd.xlane.f32.xlu0 %v1410
        %v1412 = vpop.xlane.xlu0 %1411
        %v1413 = vsel %vm1061, %v1409, 0.0
        %1414 = vadd.xlane.f32.xlu0 %v1413
        %v1415 = vpop.xlane.xlu0 %1414
        %v1416 = vrcp.pop %v1412
        %v1417 = vrcp.pop %v1415
        %v1418 = vmul.f32 %v1407, %v1416
        %v1419 = vmul.f32 %v1409, %v1417
        %1420 = vrot.lane.b32.xlu0 %v882, 48
        %v1421 = vpop.permute.xlu0 %1420
        %v1424 = vsel %vm1061, %v1418, 0
        %1426 = vmatprep.subr.mxu0 0.0
        %1427 = vmatpush1.msra.mxu0 0.0
        %1428 = vmatprep.subr.mxu0 0.0
        %1429 = vmatpush1.msra.mxu0 0.0
        %1430 = vmatprep.subr.mxu0 0.0
        %1431 = vmatpush1.msra.mxu0 0.0
        %1432 = vmatprep.subr.mxu0 0.0
        %1433 = vmatpush1.msra.mxu0 0.0
        %1434 = vmatprep.subr.mxu0 0.0
        %1435 = vmatpush1.msra.mxu0 0.0
        %1436 = vmatprep.subr.mxu0 0.0
        %1437 = vmatpush1.msra.mxu0 0.0
        %1438 = vmatprep.subr.mxu0 0.0
        %1439 = vmatpush1.msra.mxu0 0.0
        %1440 = vmatprep.subr.mxu0 0.0
        %1441 = vmatpush1.msra.mxu0 0.0
        %1442 = vmatprep.subr.mxu0 0.0
        %1443 = vmatpush1.msra.mxu0 0.0
        %1444 = vmatprep.subr.mxu0 0.0
        %1445 = vmatpush1.msra.mxu0 0.0
        %1446 = vmatprep.subr.mxu0 0.0
        %1447 = vmatpush1.msra.mxu0 0.0
        %1448 = vmatprep.subr.mxu0 0.0
        %1449 = vmatpush1.msra.mxu0 0.0
        %1450 = vmatprep.subr.mxu0 0.0
        %1451 = vmatpush1.msra.mxu0 0.0
        %1452 = vmatprep.subr.mxu0 0.0
        %1453 = vmatpush1.msra.mxu0 0.0
        %1454 = vmatprep.subr.mxu0 0.0
        %1455 = vmatpush1.msra.mxu0 0.0
        %1456 = vmatprep.subr.mxu0 0.0
        %1457 = vmatpush1.msra.mxu0 %v1421
        %1458 = vmatprep.subr.mxu0 0.0
        %1459 = vmatpush2.msra.mxu0 0.0
        %1460 = vmatprep.subr.mxu0 0.0
        %1461 = vmatpush2.msra.mxu0 0.0
        %1462 = vmatprep.subr.mxu0 0.0
        %1463 = vmatpush2.msra.mxu0 0.0
        %1464 = vmatprep.subr.mxu0 0.0
        %1465 = vmatpush2.msra.mxu0 0.0
        %1466 = vmatprep.subr.mxu0 0.0
        %1467 = vmatpush2.msra.mxu0 0.0
        %1468 = vmatprep.subr.mxu0 0.0
        %1469 = vmatpush2.msra.mxu0 0.0
        %1470 = vmatprep.subr.mxu0 0.0
        %1471 = vmatpush2.msra.mxu0 0.0
        %1472 = vmatprep.subr.mxu0 0.0
        %1473 = vmatpush2.msra.mxu0 0.0
        %1474 = vmatprep.subr.mxu0 0.0
        %1475 = vmatpush2.msra.mxu0 0.0
        %1476 = vmatprep.subr.mxu0 0.0
        %1477 = vmatpush2.msra.mxu0 0.0
        %1478 = vmatprep.subr.mxu0 0.0
        %1479 = vmatpush2.msra.mxu0 0.0
        %1480 = vmatprep.subr.mxu0 0.0
        %1481 = vmatpush2.msra.mxu0 0.0
        %1482 = vmatprep.subr.mxu0 0.0
        %1483 = vmatpush2.msra.mxu0 0.0
        %1484 = vmatprep.subr.mxu0 0.0
        %1485 = vmatpush2.msra.mxu0 0.0
        %1486 = vmatprep.subr.mxu0 0.0
        %1487 = vmatpush2.msra.mxu0 0.0
        %1488 = vmatprep.subr.mxu0 0.0
        %1489 = vmatpush2.msra.mxu0 0.0
        %1490 = vmatprep.mubr.f32.mxu0 0.0
        %1491 = vmatmul.mubr.f32.gmra.mxu0 %v1424
        %v1492 = vpop.f32.mrf.mxu0
        %v1493 = vadd.f32 0.0, %v1492
        %v1494 = vpop.f32.mrf.mxu0
        %1495 = vdwg.mxu0
        %1496 = vrot.lane.b32.xlu0 %v887, 48
        %v1497 = vpop.permute.xlu0 %1496
        %v1500 = vsel %vm1061, %v1419, 0
        %1502 = vmatprep.subr.mxu0 0.0
        %1503 = vmatpush1.msra.mxu0 0.0
        %1504 = vmatprep.subr.mxu0 0.0
        %1505 = vmatpush1.msra.mxu0 0.0
        %1506 = vmatprep.subr.mxu0 0.0
        %1507 = vmatpush1.msra.mxu0 0.0
        %1508 = vmatprep.subr.mxu0 0.0
        %1509 = vmatpush1.msra.mxu0 0.0
        %1510 = vmatprep.subr.mxu0 0.0
        %1511 = vmatpush1.msra.mxu0 0.0
        %1512 = vmatprep.subr.mxu0 0.0
        %1513 = vmatpush1.msra.mxu0 0.0
        %1514 = vmatprep.subr.mxu0 0.0
        %1515 = vmatpush1.msra.mxu0 0.0
        %1516 = vmatprep.subr.mxu0 0.0
        %1517 = vmatpush1.msra.mxu0 0.0
        %1518 = vmatprep.subr.mxu0 0.0
        %1519 = vmatpush1.msra.mxu0 0.0
        %1520 = vmatprep.subr.mxu0 0.0
        %1521 = vmatpush1.msra.mxu0 0.0
        %1522 = vmatprep.subr.mxu0 0.0
        %1523 = vmatpush1.msra.mxu0 0.0
        %1524 = vmatprep.subr.mxu0 0.0
        %1525 = vmatpush1.msra.mxu0 0.0
        %1526 = vmatprep.subr.mxu0 0.0
        %1527 = vmatpush1.msra.mxu0 0.0
        %1528 = vmatprep.subr.mxu0 0.0
        %1529 = vmatpush1.msra.mxu0 0.0
        %1530 = vmatprep.subr.mxu0 0.0
        %1531 = vmatpush1.msra.mxu0 0.0
        %1532 = vmatprep.subr.mxu0 0.0
        %1533 = vmatpush1.msra.mxu0 %v1497
        %1534 = vmatprep.subr.mxu0 0.0
        %1535 = vmatpush2.msra.mxu0 0.0
        %1536 = vmatprep.subr.mxu0 0.0
        %1537 = vmatpush2.msra.mxu0 0.0
        %1538 = vmatprep.subr.mxu0 0.0
        %1539 = vmatpush2.msra.mxu0 0.0
        %1540 = vmatprep.subr.mxu0 0.0
        %1541 = vmatpush2.msra.mxu0 0.0
        %1542 = vmatprep.subr.mxu0 0.0
        %1543 = vmatpush2.msra.mxu0 0.0
        %1544 = vmatprep.subr.mxu0 0.0
        %1545 = vmatpush2.msra.mxu0 0.0
        %1546 = vmatprep.subr.mxu0 0.0
        %1547 = vmatpush2.msra.mxu0 0.0
        %1548 = vmatprep.subr.mxu0 0.0
        %1549 = vmatpush2.msra.mxu0 0.0
        %1550 = vmatprep.subr.mxu0 0.0
        %1551 = vmatpush2.msra.mxu0 0.0
        %1552 = vmatprep.subr.mxu0 0.0
        %1553 = vmatpush2.msra.mxu0 0.0
        %1554 = vmatprep.subr.mxu0 0.0
        %1555 = vmatpush2.msra.mxu0 0.0
        %1556 = vmatprep.subr.mxu0 0.0
        %1557 = vmatpush2.msra.mxu0 0.0
        %1558 = vmatprep.subr.mxu0 0.0
        %1559 = vmatpush2.msra.mxu0 0.0
        %1560 = vmatprep.subr.mxu0 0.0
        %1561 = vmatpush2.msra.mxu0 0.0
        %1562 = vmatprep.subr.mxu0 0.0
        %1563 = vmatpush2.msra.mxu0 0.0
        %1564 = vmatprep.subr.mxu0 0.0
        %1565 = vmatpush2.msra.mxu0 0.0
        %1566 = vmatprep.mubr.f32.mxu0 0.0
        %1567 = vmatmul.mubr.f32.gmra.mxu0 %v1500
        %v1568 = vpop.f32.mrf.mxu0
        %v1569 = vadd.f32 0.0, %v1568
        %v1570 = vpop.f32.mrf.mxu0
        %1571 = vdwg.mxu0
        %v1572 = vld [vmem:[%s703 + $0x10] sm:$0xff]
        %v1573 = vld [vmem:[%s703 + $0x18] sm:$0xff]
        %v1575 = vsel %vm893, %v1493, 0
        %v1578 = vsel %vm893, %v1569, 0
        %1580 = vmatprep.subr.mxu0 0.0
        %1581 = vmatpush1.msra.mxu0 0.0
        %1582 = vmatprep.subr.mxu0 0.0
        %1583 = vmatpush1.msra.mxu0 0.0
        %1584 = vmatprep.subr.mxu0 0.0
        %1585 = vmatpush1.msra.mxu0 0.0
        %1586 = vmatprep.subr.mxu0 0.0
        %1587 = vmatpush1.msra.mxu0 0.0
        %1588 = vmatprep.subr.mxu0 0.0
        %1589 = vmatpush1.msra.mxu0 0.0
        %1590 = vmatprep.subr.mxu0 0.0
        %1591 = vmatpush1.msra.mxu0 0.0
        %1592 = vmatprep.subr.mxu0 0.0
        %1593 = vmatpush1.msra.mxu0 0.0
        %1594 = vmatprep.subr.mxu0 0.0
        %1595 = vmatpush1.msra.mxu0 0.0
        %1596 = vmatprep.subr.mxu0 0.0
        %1597 = vmatpush1.msra.mxu0 0.0
        %1598 = vmatprep.subr.mxu0 0.0
        %1599 = vmatpush1.msra.mxu0 0.0
        %1600 = vmatprep.subr.mxu0 0.0
        %1601 = vmatpush1.msra.mxu0 0.0
        %1602 = vmatprep.subr.mxu0 0.0
        %1603 = vmatpush1.msra.mxu0 0.0
        %1604 = vmatprep.subr.mxu0 0.0
        %1605 = vmatpush1.msra.mxu0 0.0
        %1606 = vmatprep.subr.mxu0 0.0
        %1607 = vmatpush1.msra.mxu0 0.0
        %1608 = vmatprep.subr.mxu0 0.0
        %1609 = vmatpush1.msra.mxu0 %v1573
        %1610 = vmatprep.subr.mxu0 0.0
        %1611 = vmatpush1.msra.mxu0 %v1572
        %1612 = vmatprep.subr.mxu0 0.0
        %1613 = vmatpush2.msra.mxu0 0.0
        %1614 = vmatprep.subr.mxu0 0.0
        %1615 = vmatpush2.msra.mxu0 0.0
        %1616 = vmatprep.subr.mxu0 0.0
        %1617 = vmatpush2.msra.mxu0 0.0
        %1618 = vmatprep.subr.mxu0 0.0
        %1619 = vmatpush2.msra.mxu0 0.0
        %1620 = vmatprep.subr.mxu0 0.0
        %1621 = vmatpush2.msra.mxu0 0.0
        %1622 = vmatprep.subr.mxu0 0.0
        %1623 = vmatpush2.msra.mxu0 0.0
        %1624 = vmatprep.subr.mxu0 0.0
        %1625 = vmatpush2.msra.mxu0 0.0
        %1626 = vmatprep.subr.mxu0 0.0
        %1627 = vmatpush2.msra.mxu0 0.0
        %1628 = vmatprep.subr.mxu0 0.0
        %1629 = vmatpush2.msra.mxu0 0.0
        %1630 = vmatprep.subr.mxu0 0.0
        %1631 = vmatpush2.msra.mxu0 0.0
        %1632 = vmatprep.subr.mxu0 0.0
        %1633 = vmatpush2.msra.mxu0 0.0
        %1634 = vmatprep.subr.mxu0 0.0
        %1635 = vmatpush2.msra.mxu0 0.0
        %1636 = vmatprep.subr.mxu0 0.0
        %1637 = vmatpush2.msra.mxu0 0.0
        %1638 = vmatprep.subr.mxu0 0.0
        %1639 = vmatpush2.msra.mxu0 0.0
        %1640 = vmatprep.subr.mxu0 0.0
        %1641 = vmatpush2.msra.mxu0 0.0
        %1642 = vmatprep.subr.mxu0 0.0
        %1643 = vmatpush2.msra.mxu0 0.0
        %1644 = vmatprep.mubr.f32.mxu0 0.0
        %1645 = vmatmul.mubr.f32.gmra.mxu0 %v1575
        %v1646 = vpop.f32.mrf.mxu0
        %v1647 = vadd.f32 0.0, %v1646
        %v1648 = vpop.f32.mrf.mxu0
        %1649 = vmatprep.mubr.f32.mxu0 0.0
        %1650 = vmatmul.mubr.f32.gmra.mxu0 %v1578
        %v1651 = vpop.f32.mrf.mxu0
        %v1652 = vadd.f32 0.0, %v1651
        %v1653 = vpop.f32.mrf.mxu0
        %1654 = vdwg.mxu0
        %v1656 = vsel %vm893, %v1157, 0
        %v1659 = vsel %vm893, %v1233, 0
        %1661 = vmatprep.subr.mxu0 0.0
        %1662 = vmatpush1.msra.mxu0 0.0
        %1663 = vmatprep.subr.mxu0 0.0
        %1664 = vmatpush1.msra.mxu0 0.0
        %1665 = vmatprep.subr.mxu0 0.0
        %1666 = vmatpush1.msra.mxu0 0.0
        %1667 = vmatprep.subr.mxu0 0.0
        %1668 = vmatpush1.msra.mxu0 0.0
        %1669 = vmatprep.subr.mxu0 0.0
        %1670 = vmatpush1.msra.mxu0 0.0
        %1671 = vmatprep.subr.mxu0 0.0
        %1672 = vmatpush1.msra.mxu0 0.0
        %1673 = vmatprep.subr.mxu0 0.0
        %1674 = vmatpush1.msra.mxu0 0.0
        %1675 = vmatprep.subr.mxu0 0.0
        %1676 = vmatpush1.msra.mxu0 0.0
        %1677 = vmatprep.subr.mxu0 0.0
        %1678 = vmatpush1.msra.mxu0 0.0
        %1679 = vmatprep.subr.mxu0 0.0
        %1680 = vmatpush1.msra.mxu0 0.0
        %1681 = vmatprep.subr.mxu0 0.0
        %1682 = vmatpush1.msra.mxu0 0.0
        %1683 = vmatprep.subr.mxu0 0.0
        %1684 = vmatpush1.msra.mxu0 0.0
        %1685 = vmatprep.subr.mxu0 0.0
        %1686 = vmatpush1.msra.mxu0 0.0
        %1687 = vmatprep.subr.mxu0 0.0
        %1688 = vmatpush1.msra.mxu0 0.0
        %1689 = vmatprep.subr.mxu0 0.0
        %1690 = vmatpush1.msra.mxu0 %v1237
        %1691 = vmatprep.subr.mxu0 0.0
        %1692 = vmatpush1.msra.mxu0 %v1236
        %1693 = vmatprep.subr.mxu0 0.0
        %1694 = vmatpush2.msra.mxu0 0.0
        %1695 = vmatprep.subr.mxu0 0.0
        %1696 = vmatpush2.msra.mxu0 0.0
        %1697 = vmatprep.subr.mxu0 0.0
        %1698 = vmatpush2.msra.mxu0 0.0
        %1699 = vmatprep.subr.mxu0 0.0
        %1700 = vmatpush2.msra.mxu0 0.0
        %1701 = vmatprep.subr.mxu0 0.0
        %1702 = vmatpush2.msra.mxu0 0.0
        %1703 = vmatprep.subr.mxu0 0.0
        %1704 = vmatpush2.msra.mxu0 0.0
        %1705 = vmatprep.subr.mxu0 0.0
        %1706 = vmatpush2.msra.mxu0 0.0
        %1707 = vmatprep.subr.mxu0 0.0
        %1708 = vmatpush2.msra.mxu0 0.0
        %1709 = vmatprep.subr.mxu0 0.0
        %1710 = vmatpush2.msra.mxu0 0.0
        %1711 = vmatprep.subr.mxu0 0.0
        %1712 = vmatpush2.msra.mxu0 0.0
        %1713 = vmatprep.subr.mxu0 0.0
        %1714 = vmatpush2.msra.mxu0 0.0
        %1715 = vmatprep.subr.mxu0 0.0
        %1716 = vmatpush2.msra.mxu0 0.0
        %1717 = vmatprep.subr.mxu0 0.0
        %1718 = vmatpush2.msra.mxu0 0.0
        %1719 = vmatprep.subr.mxu0 0.0
        %1720 = vmatpush2.msra.mxu0 0.0
        %1721 = vmatprep.subr.mxu0 0.0
        %1722 = vmatpush2.msra.mxu0 0.0
        %1723 = vmatprep.subr.mxu0 0.0
        %1724 = vmatpush2.msra.mxu0 0.0
        %1725 = vmatprep.mubr.f32.mxu0 0.0
        %1726 = vmatmul.mubr.f32.gmra.mxu0 %v1656
        %v1727 = vpop.f32.mrf.mxu0
        %v1728 = vadd.f32 %v1647, %v1727
        %v1729 = vpop.f32.mrf.mxu0
        %1730 = vmatprep.mubr.f32.mxu0 0.0
        %1731 = vmatmul.mubr.f32.gmra.mxu0 %v1659
        %v1732 = vpop.f32.mrf.mxu0
        %v1733 = vadd.f32 %v1652, %v1732
        %v1734 = vpop.f32.mrf.mxu0
        %1735 = vdwg.mxu0
        %v1736 = vld [vmem:[%s706] sm:$0x1]
        %v1738 = vlaneseq
        %v1739 = vshrl.u32 %v1738, 7
        %v1740 = vsub.s32 0, %v1739
        %v1741 = vrot.slane %v1736, %v1740
        %v1743 = vadd.f32 %v1728, %v1741
        %v1744 = vadd.f32 %v1733, %v1741
        %v1745 = vadd.f32 %v1743, %v789
        %v1746 = vadd.f32 %v1744, %v790
        %v1747 = vld [vmem:[%s709] sm:$0x1]
        %v1748 = vld [vmem:[%s712] sm:$0x1]
        %v1749 = vsel %vm808, %v1745, 0.0
        %1750 = vadd.xlane.f32.xlu0 %v1749
        %v1751 = vpop.xlane.xlu0 %1750
        %v1752 = vsel %vm808, %v1746, 0.0
        %1753 = vadd.xlane.f32.xlu0 %v1752
        %v1754 = vpop.xlane.xlu0 %1753
        %v1755 = vrcp.pop 32.0
        %v1756 = vmul.f32 %v1751, %v1755
        %v1757 = vmul.f32 %v1754, %v1755
        %v1758 = vsub.f32 %v1745, %v1756
        %v1759 = vsub.f32 %v1746, %v1757
        %v1760 = vmul.f32 %v1758, %v1758
        %v1761 = vmul.f32 %v1759, %v1759
        %v1762 = vsel %vm808, %v1760, 0.0
        %1763 = vadd.xlane.f32.xlu0 %v1762
        %v1764 = vpop.xlane.xlu0 %1763
        %v1765 = vsel %vm808, %v1761, 0.0
        %1766 = vadd.xlane.f32.xlu0 %v1765
        %v1767 = vpop.xlane.xlu0 %1766
        %v1768 = vmul.f32 %v1764, %v1755
        %v1769 = vmul.f32 %v1767, %v1755
        %v1770 = vadd.f32 %v1768, 1e-12
        %v1771 = vadd.f32 %v1769, 1e-12
        %v1772 = vrsqrt.pop %v1770
        %v1773 = vrsqrt.pop %v1771
        %v1774 = vmul.f32 %v1758, %v1772
        %v1775 = vmul.f32 %v1759, %v1773
        %v1777 = vlaneseq
        %v1778 = vshrl.u32 %v1777, 7
        %v1779 = vsub.s32 0, %v1778
        %v1780 = vrot.slane %v1747, %v1779
        %v1782 = vmul.f32 %v1774, %v1780
        %v1783 = vmul.f32 %v1775, %v1780
        %v1785 = vlaneseq
        %v1786 = vshrl.u32 %v1785, 7
        %v1787 = vsub.s32 0, %v1786
        %v1788 = vrot.slane %v1748, %v1787
        %v1790 = vadd.f32 %v1782, %v1788
        %v1791 = vadd.f32 %v1783, %v1788
        %v1792 = vld [vmem:[%s717] sm:$0xff]
        %v1793 = vld [vmem:[%s717 + $0x8] sm:$0xff]
        %v1794 = vld [vmem:[%s717 + $0x10] sm:$0xff]
        %v1795 = vld [vmem:[%s717 + $0x18] sm:$0xff]
        %v1796 = vld [vmem:[%s720] sm:$0x1]
        %v1798 = vlaneseq
        %v1799 = vshrl.u32 %v1798, 7
        %v1800 = vsub.s32 0, %v1799
        %v1801 = vrot.slane %v1796, %v1800
        %v1804 = vsel %vm808, %v1790, 0
        %v1807 = vsel %vm808, %v1791, 0
        %1809 = vmatprep.subr.mxu0 0.0
        %1810 = vmatpush1.msra.mxu0 0.0
        %1811 = vmatprep.subr.mxu0 0.0
        %1812 = vmatpush1.msra.mxu0 0.0
        %1813 = vmatprep.subr.mxu0 0.0
        %1814 = vmatpush1.msra.mxu0 0.0
        %1815 = vmatprep.subr.mxu0 0.0
        %1816 = vmatpush1.msra.mxu0 0.0
        %1817 = vmatprep.subr.mxu0 0.0
        %1818 = vmatpush1.msra.mxu0 0.0
        %1819 = vmatprep.subr.mxu0 0.0
        %1820 = vmatpush1.msra.mxu0 0.0
        %1821 = vmatprep.subr.mxu0 0.0
        %1822 = vmatpush1.msra.mxu0 0.0
        %1823 = vmatprep.subr.mxu0 0.0
        %1824 = vmatpush1.msra.mxu0 0.0
        %1825 = vmatprep.subr.mxu0 0.0
        %1826 = vmatpush1.msra.mxu0 0.0
        %1827 = vmatprep.subr.mxu0 0.0
        %1828 = vmatpush1.msra.mxu0 0.0
        %1829 = vmatprep.subr.mxu0 0.0
        %1830 = vmatpush1.msra.mxu0 0.0
        %1831 = vmatprep.subr.mxu0 0.0
        %1832 = vmatpush1.msra.mxu0 0.0
        %1833 = vmatprep.subr.mxu0 0.0
        %1834 = vmatpush1.msra.mxu0 %v1795
        %1835 = vmatprep.subr.mxu0 0.0
        %1836 = vmatpush1.msra.mxu0 %v1794
        %1837 = vmatprep.subr.mxu0 0.0
        %1838 = vmatpush1.msra.mxu0 %v1793
        %1839 = vmatprep.subr.mxu0 0.0
        %1840 = vmatpush1.msra.mxu0 %v1792
        %1841 = vmatprep.subr.mxu0 0.0
        %1842 = vmatpush2.msra.mxu0 0.0
        %1843 = vmatprep.subr.mxu0 0.0
        %1844 = vmatpush2.msra.mxu0 0.0
        %1845 = vmatprep.subr.mxu0 0.0
        %1846 = vmatpush2.msra.mxu0 0.0
        %1847 = vmatprep.subr.mxu0 0.0
        %1848 = vmatpush2.msra.mxu0 0.0
        %1849 = vmatprep.subr.mxu0 0.0
        %1850 = vmatpush2.msra.mxu0 0.0
        %1851 = vmatprep.subr.mxu0 0.0
        %1852 = vmatpush2.msra.mxu0 0.0
        %1853 = vmatprep.subr.mxu0 0.0
        %1854 = vmatpush2.msra.mxu0 0.0
        %1855 = vmatprep.subr.mxu0 0.0
        %1856 = vmatpush2.msra.mxu0 0.0
        %1857 = vmatprep.subr.mxu0 0.0
        %1858 = vmatpush2.msra.mxu0 0.0
        %1859 = vmatprep.subr.mxu0 0.0
        %1860 = vmatpush2.msra.mxu0 0.0
        %1861 = vmatprep.subr.mxu0 0.0
        %1862 = vmatpush2.msra.mxu0 0.0
        %1863 = vmatprep.subr.mxu0 0.0
        %1864 = vmatpush2.msra.mxu0 0.0
        %1865 = vmatprep.subr.mxu0 0.0
        %1866 = vmatpush2.msra.mxu0 0.0
        %1867 = vmatprep.subr.mxu0 0.0
        %1868 = vmatpush2.msra.mxu0 0.0
        %1869 = vmatprep.subr.mxu0 0.0
        %1870 = vmatpush2.msra.mxu0 0.0
        %1871 = vmatprep.subr.mxu0 0.0
        %1872 = vmatpush2.msra.mxu0 0.0
        %1873 = vmatprep.mubr.f32.mxu0 0.0
        %1874 = vmatmul.mubr.f32.gmra.mxu0 %v1804
        %v1875 = vpop.f32.mrf.mxu0
        %v1876 = vadd.f32 %v1801, %v1875
        %v1877 = vpop.f32.mrf.mxu0
        %1878 = vmatprep.mubr.f32.mxu0 0.0
        %1879 = vmatmul.mubr.f32.gmra.mxu0 %v1807
        %v1880 = vpop.f32.mrf.mxu0
        %v1881 = vadd.f32 %v1801, %v1880
        %v1882 = vpop.f32.mrf.mxu0
        %1883 = vdwg.mxu0
        %v1884 = vmul.f32 %v1876, %v1876
        %v1885 = vmul.f32 %v1881, %v1881
        %v1886 = vmul.f32 %v1876, %v1884
        %v1887 = vmul.f32 %v1881, %v1885
        %v1888 = vmul.f32 %v1886, 0.044715
        %v1889 = vmul.f32 %v1887, 0.044715
        %v1890 = vadd.f32 %v1876, %v1888
        %v1891 = vadd.f32 %v1881, %v1889
        %v1892 = vmul.f32 %v1890, 0.7978846
        %v1893 = vmul.f32 %v1891, 0.7978846
        %v1894 = vtanh.pop %v1892
        %v1895 = vtanh.pop %v1893
        %v1896 = vadd.f32 %v1894, 1.0
        %v1897 = vadd.f32 %v1895, 1.0
        %v1898 = vmul.f32 %v1896, 0.5
        %v1899 = vmul.f32 %v1897, 0.5
        %v1900 = vmul.f32 %v1876, %v1898
        %v1901 = vmul.f32 %v1881, %v1899
        %v1902 = vld [vmem:[%s725] sm:$0xff]
        %v1903 = vld [vmem:[%s725 + $0x8] sm:$0xff]
        %v1904 = vld [vmem:[%s725 + $0x10] sm:$0xff]
        %v1905 = vld [vmem:[%s725 + $0x18] sm:$0xff]
        %v1906 = vld [vmem:[%s725 + $0x20] sm:$0xff]
        %v1907 = vld [vmem:[%s725 + $0x28] sm:$0xff]
        %v1908 = vld [vmem:[%s725 + $0x30] sm:$0xff]
        %v1909 = vld [vmem:[%s725 + $0x38] sm:$0xff]
        %v1910 = vld [vmem:[%s728] sm:$0x1]
        %v1912 = vlaneseq
        %v1913 = vshrl.u32 %v1912, 7
        %v1914 = vsub.s32 0, %v1913
        %v1915 = vrot.slane %v1910, %v1914
        %vm1917 = vcmask 523264
        %v1919 = vsel %vm1917, %v1900, 0
        %v1922 = vsel %vm1917, %v1901, 0
        %1924 = vmatprep.subr.mxu0 0.0
        %1925 = vmatpush1.msra.mxu0 0.0
        %1926 = vmatprep.subr.mxu0 0.0
        %1927 = vmatpush1.msra.mxu0 0.0
        %1928 = vmatprep.subr.mxu0 0.0
        %1929 = vmatpush1.msra.mxu0 0.0
        %1930 = vmatprep.subr.mxu0 0.0
        %1931 = vmatpush1.msra.mxu0 0.0
        %1932 = vmatprep.subr.mxu0 0.0
        %1933 = vmatpush1.msra.mxu0 0.0
        %1934 = vmatprep.subr.mxu0 0.0
        %1935 = vmatpush1.msra.mxu0 0.0
        %1936 = vmatprep.subr.mxu0 0.0
        %1937 = vmatpush1.msra.mxu0 0.0
        %1938 = vmatprep.subr.mxu0 0.0
        %1939 = vmatpush1.msra.mxu0 0.0
        %1940 = vmatprep.subr.mxu0 0.0
        %1941 = vmatpush1.msra.mxu0 %v1909
        %1942 = vmatprep.subr.mxu0 0.0
        %1943 = vmatpush1.msra.mxu0 %v1908
        %1944 = vmatprep.subr.mxu0 0.0
        %1945 = vmatpush1.msra.mxu0 %v1907
        %1946 = vmatprep.subr.mxu0 0.0
        %1947 = vmatpush1.msra.mxu0 %v1906
        %1948 = vmatprep.subr.mxu0 0.0
        %1949 = vmatpush1.msra.mxu0 %v1905
        %1950 = vmatprep.subr.mxu0 0.0
        %1951 = vmatpush1.msra.mxu0 %v1904
        %1952 = vmatprep.subr.mxu0 0.0
        %1953 = vmatpush1.msra.mxu0 %v1903
        %1954 = vmatprep.subr.mxu0 0.0
        %1955 = vmatpush1.msra.mxu0 %v1902
        %1956 = vmatprep.subr.mxu0 0.0
        %1957 = vmatpush2.msra.mxu0 0.0
        %1958 = vmatprep.subr.mxu0 0.0
        %1959 = vmatpush2.msra.mxu0 0.0
        %1960 = vmatprep.subr.mxu0 0.0
        %1961 = vmatpush2.msra.mxu0 0.0
        %1962 = vmatprep.subr.mxu0 0.0
        %1963 = vmatpush2.msra.mxu0 0.0
        %1964 = vmatprep.subr.mxu0 0.0
        %1965 = vmatpush2.msra.mxu0 0.0
        %1966 = vmatprep.subr.mxu0 0.0
        %1967 = vmatpush2.msra.mxu0 0.0
        %1968 = vmatprep.subr.mxu0 0.0
        %1969 = vmatpush2.msra.mxu0 0.0
        %1970 = vmatprep.subr.mxu0 0.0
        %1971 = vmatpush2.msra.mxu0 0.0
        %1972 = vmatprep.subr.mxu0 0.0
        %1973 = vmatpush2.msra.mxu0 0.0
        %1974 = vmatprep.subr.mxu0 0.0
        %1975 = vmatpush2.msra.mxu0 0.0
        %1976 = vmatprep.subr.mxu0 0.0
        %1977 = vmatpush2.msra.mxu0 0.0
        %1978 = vmatprep.subr.mxu0 0.0
        %1979 = vmatpush2.msra.mxu0 0.0
        %1980 = vmatprep.subr.mxu0 0.0
        %1981 = vmatpush2.msra.mxu0 0.0
        %1982 = vmatprep.subr.mxu0 0.0
        %1983 = vmatpush2.msra.mxu0 0.0
        %1984 = vmatprep.subr.mxu0 0.0
        %1985 = vmatpush2.msra.mxu0 0.0
        %1986 = vmatprep.subr.mxu0 0.0
        %1987 = vmatpush2.msra.mxu0 0.0
        %1988 = vmatprep.mubr.f32.mxu0 0.0
        %1989 = vmatmul.mubr.f32.gmra.mxu0 %v1919
        %v1990 = vpop.f32.mrf.mxu0
        %v1991 = vadd.f32 %v1915, %v1990
        %v1992 = vpop.f32.mrf.mxu0
        %1993 = vmatprep.mubr.f32.mxu0 0.0
        %1994 = vmatmul.mubr.f32.gmra.mxu0 %v1922
        %v1995 = vpop.f32.mrf.mxu0
        %v1996 = vadd.f32 %v1915, %v1995
        %v1997 = vpop.f32.mrf.mxu0
        %1998 = vdwg.mxu0
        %v1999 = vadd.f32 %v1991, %v1790
        %v2000 = vadd.f32 %v1996, %v1791
        %v2001 = vld [vmem:[%s731] sm:$0x1]
        %v2002 = vld [vmem:[%s734] sm:$0x1]
        %v2003 = vsel %vm808, %v1999, 0.0
        %2004 = vadd.xlane.f32.xlu0 %v2003
        %v2005 = vpop.xlane.xlu0 %2004
        %v2006 = vsel %vm808, %v2000, 0.0
        %2007 = vadd.xlane.f32.xlu0 %v2006
        %v2008 = vpop.xlane.xlu0 %2007
        %v2009 = vmul.f32 %v2005, %v1755
        %v2010 = vmul.f32 %v2008, %v1755
        %v2011 = vsub.f32 %v1999, %v2009
        %v2012 = vsub.f32 %v2000, %v2010
        %v2013 = vmul.f32 %v2011, %v2011
        %v2014 = vmul.f32 %v2012, %v2012
        %v2015 = vsel %vm808, %v2013, 0.0
        %2016 = vadd.xlane.f32.xlu0 %v2015
        %v2017 = vpop.xlane.xlu0 %2016
        %v2018 = vsel %vm808, %v2014, 0.0
        %2019 = vadd.xlane.f32.xlu0 %v2018
        %v2020 = vpop.xlane.xlu0 %2019
        %v2021 = vmul.f32 %v2017, %v1755
        %v2022 = vmul.f32 %v2020, %v1755
        %v2023 = vadd.f32 %v2021, 1e-12
        %v2024 = vadd.f32 %v2022, 1e-12
        %v2025 = vrsqrt.pop %v2023
        %v2026 = vrsqrt.pop %v2024
        %v2027 = vmul.f32 %v2011, %v2025
        %v2028 = vmul.f32 %v2012, %v2026
        %v2030 = vlaneseq
        %v2031 = vshrl.u32 %v2030, 7
        %v2032 = vsub.s32 0, %v2031
        %v2033 = vrot.slane %v2001, %v2032
        %v2035 = vmul.f32 %v2027, %v2033
        %v2036 = vmul.f32 %v2028, %v2033
        %v2038 = vlaneseq
        %v2039 = vshrl.u32 %v2038, 7
        %v2040 = vsub.s32 0, %v2039
        %v2041 = vrot.slane %v2002, %v2040
        %v2043 = vadd.f32 %v2035, %v2041
        %v2044 = vadd.f32 %v2036, %v2041
        %2045 = vst.msk [vmem:[#allocation10] sm:$0xff] %vm808, %v2043
        %2046 = vst.msk [vmem:[#allocation10 + $0x8] sm:$0xff] %vm808, %v2044
        // Predicated region
        $region105: #{tpu_custom_call.1} parent=83 // pred_check
          %p2047 = pneg %p440
        $region106: #{tpu_custom_call.1} parent=83 // pred_check_branch
          %2049 = sbr.rel (%p2047) target = $region108
        $region107: #{tpu_custom_call.1} parent=83 // pred_region
          %s2051 = ssub.s32 256, 256
          %2052 = vsyncadd [#allocation4], %s2051
          %s2053 = sshll.u32 [#allocation10], 4
          %s2054 = int_to_ptr.vmem [resolvable:$true] %s2053
          %2059 = dma.vmem_to_hbm [thread:$0]  %s2054, 256, %s16, [#allocation4], 128, 128, 8
        $region108: #{tpu_custom_call.1} parent=83 // pred_fallthru
          _
        // Predicated region
        $region109: #{tpu_custom_call.1} parent=83 // pred_check
          %p2060 = pneg %p440
        $region110: #{tpu_custom_call.1} parent=83 // pred_check_branch
          %2062 = sbr.rel (%p2060) target = $region112
        $region111: #{tpu_custom_call.1} parent=83 // pred_region
          %2063 = dma.done [#allocation4], 256
        $region112: #{tpu_custom_call.1} parent=83 // pred_fallthru
          _
      $region84: #{tpu_custom_call.1} parent=5 // pred_fallthru
        _
      %p2064 = scmp.le.s32.totalorder 2, %s26
      // Predicated region
      $region113: #{tpu_custom_call.1} parent=5 // pred_check
        %p2065 = pneg %p2064
      $region114: #{tpu_custom_call.1} parent=5 // pred_check_branch
        %2067 = sbr.rel (%p2065) target = $region116
      $region115: #{tpu_custom_call.1} parent=5 // pred_region
        %s2068 = ssub.s32 %s26, 2
      $region116: #{tpu_custom_call.1} parent=5 // pred_fallthru
        _
    $region6: #{tpu_custom_call.1} parent=1 // loop_footer
      %s30 = sadd.s32 1, %s26
    $region7: #{tpu_custom_call.1} parent=1 // loop_footer_branch
      %25 = sbr.rel target = $region3
    $region8: #{tpu_custom_call.1} parent=1 // loop_exit
      _
    %2069 = vsyncpa [#allocation3], 1
    %s2070 = scalar_lea.sflag [#allocation3], 1
    %2071 = vsyncpa %s2070, 1
    %2072 = vsyncpa [#allocation6], 1
    %2073 = vsyncpa [#allocation9], 1
    %2074 = vsyncpa [#allocation4], 1
    %s2075 = scalar_lea.sflag [#allocation4], 1
    %2076 = vsyncpa %s2075, 1

</llo_original>
